<compile_context>
chip_gen: v6e
topology: v6e:2x2x1
jax: 0.10.0
libtpu: 0.0.40
codegen_flags: <defaults>
</compile_context>

<pallas_src>
import functools

import jax
import jax.numpy as jnp
from jax.experimental import pallas as pl
from jax.experimental.pallas import tpu as pltpu

_LANE = 128   # lane width: feature dims / contraction tiles align to this
_ROW = 16     # sublane row unit (16 keeps bf16 (16,128) packing aligned)


def _round_up(x, m):
    return (x + m - 1) // m * m


@functools.lru_cache(maxsize=1)
def _vmem_budget_bytes():
    """Usable VMEM budget: physical capacity (64 MiB v7x / 128 MiB v5e,v6e)
    with ~25% headroom left for compiler temporaries."""
    try:
        cap = int(pltpu.get_tpu_info().vmem_capacity_bytes)
    except Exception:
        cap = 64 * 1024 * 1024
    return (3 * cap) // 4


def _pick_tile(n, unit, cap):
    """Largest multiple of `unit` that divides n and is <= cap (n % unit == 0)."""
    t = max(unit, min(n, (cap // unit) * unit))
    while n % t:
        t -= unit
    return t


# ----------------------------------------------------------------------------
# Pallas kernels
# ----------------------------------------------------------------------------
def _layer_kernel(a_ref, x_ref, w_ref, b_ref, o_ref, acc_ref, accr_ref, *, short_cut):
    """One fused GearNet layer step on grid (i rows, r relations, k K-tiles):

        accr  += A[r, i-tile, k-tile] @ X[k-tile]            (per-relation agg)
        k末:    acc  += accr @ W[r]                            (relation mix)
        (r,k)末: out = relu(acc + bias) [+ shortcut]           (finalize)
    """
    r = pl.program_id(1)
    k = pl.program_id(2)
    nr = pl.num_programs(1)
    nk = pl.num_programs(2)

    @pl.when(jnp.logical_and(r == 0, k == 0))
    def _():
        acc_ref[...] = jnp.zeros_like(acc_ref)

    @pl.when(k == 0)
    def _():
        accr_ref[...] = jnp.zeros_like(accr_ref)

    accr_ref[...] += jnp.dot(a_ref[0], x_ref[...],
                             preferred_element_type=jnp.float32)

    @pl.when(k == nk - 1)
    def _():
        acc_ref[...] += jnp.dot(accr_ref[...].astype(w_ref.dtype), w_ref[0],
                                preferred_element_type=jnp.float32)

    @pl.when(jnp.logical_and(r == nr - 1, k == nk - 1))
    def _():
        h = jnp.maximum(acc_ref[...] + b_ref[...], 0.0)    # fused (bl+bs) + relu
        if short_cut:
            # The last relation is the self-loop whose adjacency block is the
            # identity, so accr_ref holds exactly the X row tile here — reuse
            # it as the residual instead of DMA-ing X a second time.
            h = h + accr_ref[...]
        o_ref[...] = h.astype(o_ref.dtype)


def _readout_kernel(m_ref, f_ref, out_ref, acc_ref):
    """Sum readout: graph_feature = member (G, N) @ node_feature (N, D), tiled over N."""
    k = pl.program_id(0)

    @pl.when(k == 0)
    def _():
        acc_ref[...] = jnp.zeros_like(acc_ref)

    acc_ref[...] += jnp.dot(m_ref[...], f_ref[...],
                            preferred_element_type=jnp.float32)

    @pl.when(k == pl.num_programs(0) - 1)
    def _():
        out_ref[...] = acc_ref[...]


# ----------------------------------------------------------------------------
# Wrappers
# ----------------------------------------------------------------------------
def relational_layer(adj3, x, w_all, bias, *, short_cut, tm_cap=256, tk_cap=2048):
    """H = relu(sum_r A_r @ X @ W_r + bias) [+ X] — one fused, pipelined kernel."""
    rp1, np_, _ = adj3.shape
    dinp = x.shape[1]
    doutp = w_all.shape[2]
    in_bytes = adj3.dtype.itemsize
    out_bytes = x.dtype.itemsize
    budget = _vmem_budget_bytes()

    tm = _pick_tile(np_, _ROW, tm_cap)
    tk = _pick_tile(np_, _LANE, min(tk_cap, np_))

    def vmem_need(tm_, tk_):
        # double-buffered inputs (A tile, X tile, W_r, bias) + double-buffered
        # output + two f32 accumulators
        ins = tm_ * tk_ + tk_ * dinp + dinp * doutp
        return (2 * in_bytes * ins + 2 * 4 * doutp
                + 2 * out_bytes * tm_ * doutp
                + 4 * tm_ * (doutp + dinp))

    while tk > _LANE and vmem_need(tm, tk) > budget:
        tk = _pick_tile(np_, _LANE, tk - _LANE)
    while tm > _ROW and vmem_need(tm, tk) > budget:
        tm = _pick_tile(np_, _ROW, tm - _ROW)

    kernel = functools.partial(_layer_kernel, short_cut=short_cut)
    return pl.pallas_call(
        kernel,
        out_shape=jax.ShapeDtypeStruct((np_, doutp), x.dtype),
        grid_spec=pltpu.PrefetchScalarGridSpec(
            num_scalar_prefetch=0,
            grid=(np_ // tm, rp1, np_ // tk),
            in_specs=[
                pl.BlockSpec((1, tm, tk), lambda i, r, k: (r, i, k)),      # A_r tile
                pl.BlockSpec((tk, dinp), lambda i, r, k: (k, 0)),          # X tile
                pl.BlockSpec((1, dinp, doutp), lambda i, r, k: (r, 0, 0)), # W_r
                pl.BlockSpec((1, doutp), lambda i, r, k: (0, 0)),          # fused bias
            ],
            out_specs=pl.BlockSpec((tm, doutp), lambda i, r, k: (i, 0)),
            scratch_shapes=[pltpu.VMEM((tm, doutp), jnp.float32),
                            pltpu.VMEM((tm, dinp), jnp.float32)],
        ),
        compiler_params=pltpu.CompilerParams(
            dimension_semantics=("parallel", "arbitrary", "arbitrary"),
            vmem_limit_bytes=budget,
        ),
    )(adj3, x, w_all, bias)


def sum_readout(member, node_feature, *, tn_cap=512):
    gp, np_ = member.shape
    dp = node_feature.shape[1]
    tn = _pick_tile(np_, _LANE, tn_cap)
    return pl.pallas_call(
        _readout_kernel,
        out_shape=jax.ShapeDtypeStruct((gp, dp), jnp.float32),
        grid_spec=pltpu.PrefetchScalarGridSpec(
            num_scalar_prefetch=0,
            grid=(np_ // tn,),
            in_specs=[
                pl.BlockSpec((gp, tn), lambda k: (0, k)),
                pl.BlockSpec((tn, dp), lambda k: (k, 0)),
            ],
            out_specs=pl.BlockSpec((gp, dp), lambda k: (0, 0)),
            scratch_shapes=[pltpu.VMEM((gp, dp), jnp.float32)],
        ),
        compiler_params=pltpu.CompilerParams(
            dimension_semantics=("arbitrary",),
            vmem_limit_bytes=_vmem_budget_bytes(),
        ),
    )(member, node_feature)


def gearnet_forward(node_input, edge_list, edge_weight, node2graph, num_graphs,
                    params, *, num_relation, short_cut=True, concat_hidden=False,
                    compute_dtype=jnp.bfloat16, tm_cap=256, tk_cap=2048):
    """Full GearNet forward -> (node_feature, graph_feature)."""
    n, din0 = node_input.shape
    r = num_relation
    np_ = _round_up(n, _LANE)                 # lane/tile-aligned node count

    src, dst, rel = edge_list[:, 0], edge_list[:, 1], edge_list[:, 2]
    # Dense relational adjacency A[r, v, u] = sum_e w_e  (e: u->v, relation r),
    # with an identity block appended as relation R so the self-loop term rides
    # the same fused contraction (and doubles as the residual source).
    adj = jnp.zeros((r + 1, np_, np_), jnp.float32)
    adj = adj.at[rel, dst, src].add(edge_weight.astype(jnp.float32))
    ids = jnp.arange(n)
    adj = adj.at[r, ids, ids].add(1.0)
    adj = adj.astype(compute_dtype)
    # TODO(synk): for realistic sparse protein graphs, replace this O(R*N^2)
    # densification with a CSR gather path (PrefetchScalarGridSpec row offsets)
    # so adjacency HBM traffic scales with the edge count, not N^2.

    gp = _round_up(max(num_graphs, _ROW), _ROW)
    member = (node2graph[None, :] == jnp.arange(num_graphs)[:, None]).astype(jnp.float32)
    member = jnp.pad(member, ((0, gp - num_graphs), (0, np_ - n))).astype(compute_dtype)

    x = jnp.pad(node_input.astype(jnp.float32),
                ((0, np_ - n), (0, _round_up(din0, _LANE) - din0))).astype(compute_dtype)

    hiddens, douts = [], []
    for (wl, bl, ws, bs) in params:
        din, dout = ws.shape
        dinp, doutp = _round_up(din, _LANE), _round_up(dout, _LANE)
        # Stack relational + self-loop weights -> (R+1, Dinp, Doutp); fold both biases.
        w_all = jnp.concatenate([wl, ws[None]], axis=0)
        w_all = jnp.pad(w_all, ((0, 0), (0, dinp - din), (0, doutp - dout)))
        w_all = w_all.astype(compute_dtype)
        bias = jnp.pad(bl + bs, ((0, 0), (0, doutp - dout))).astype(jnp.float32)

        sc = short_cut and (din == dout)
        h = relational_layer(adj, x, w_all, bias, short_cut=sc,
                             tm_cap=tm_cap, tk_cap=tk_cap)          # (Np, Doutp)
        hiddens.append(h)
        douts.append(dout)
        x = h
    # TODO(synk): num_angle_bin edge message passing and BatchNorm1d are disabled
    # in this config (num_angle_bin=None, batch_norm=False).

    if concat_hidden:
        node_feature = jnp.concatenate(
            [h[:n, :d].astype(jnp.float32) for h, d in zip(hiddens, douts)], axis=-1)
        dfull = node_feature.shape[1]
        feat = jnp.pad(node_feature,
                       ((0, np_ - n), (0, _round_up(dfull, _LANE) - dfull)))
        feat = feat.astype(compute_dtype)
    else:
        node_feature = hiddens[-1][:n, :douts[-1]].astype(jnp.float32)
        feat = hiddens[-1]                          # already padded & lane-dense

    graph_pad = sum_readout(member, feat, tn_cap=tk_cap)   # (Gp, Dp) f32
    graph_feature = graph_pad[:num_graphs, :node_feature.shape[1]]
    return node_feature, graph_feature


# ----------------------------------------------------------------------------
# Pure-JAX reference (mirrors torchdrug semantics) for validation
# ----------------------------------------------------------------------------
def gearnet_reference(node_input, edge_list, edge_weight, node2graph, num_graphs,
                      params, *, num_relation, short_cut=True, concat_hidden=False):
    n = node_input.shape[0]
    hiddens = []
    layer_input = node_input
    for (wl, bl, ws, bs) in params:
        din, dout = ws.shape
        msg = layer_input[edge_list[:, 0]] * edge_weight[:, None]
        node_out = edge_list[:, 1] * num_relation + edge_list[:, 2]
        update = jnp.zeros((n * num_relation, din), jnp.float32)
        update = update.at[node_out].add(msg)
        update = update.reshape(n, num_relation, din)
        out = jnp.einsum('nrd,rdo->no', update, wl) + bl[0]
        out = out + layer_input @ ws + bs[0]
        out = jnp.maximum(out, 0.0)
        if short_cut and din == dout:
            out = out + layer_input
        hiddens.append(out)
        layer_input = out
    node_feature = jnp.concatenate(hiddens, -1) if concat_hidden else hiddens[-1]
    member = (node2graph[None, :] == jnp.arange(num_graphs)[:, None]).astype(jnp.float32)
    graph_feature = member @ node_feature
    return node_feature, graph_feature


# ----------------------------------------------------------------------------
# Main
# ----------------------------------------------------------------------------
if __name__ == "__main__":
    key = jax.random.PRNGKey(0)

    # Small synthetic batch of 2 graphs.
    N = 200           # total nodes over both graphs
    E = 600           # edges
    R = 4             # num_relation
    G = 2             # number of graphs
    input_dim = 32
    hidden_dims = [32, 32]

    k1, k2, k3, k4, kparam = jax.random.split(key, 5)
    node_input = jax.random.normal(k1, (N, input_dim), jnp.float32)
    src = jax.random.randint(k2, (E,), 0, N, jnp.int32)
    dst = jax.random.randint(k3, (E,), 0, N, jnp.int32)
    rel = jax.random.randint(k4, (E,), 0, R, jnp.int32)
    edge_list = jnp.stack([src, dst, rel], axis=1)              # (E, 3)
    edge_weight = jnp.ones((E,), jnp.float32)
    node2graph = (jnp.arange(N) >= N // 2).astype(jnp.int32)    # first/second half

    # Deterministic parameter init (shapes from the module's __init__).
    dims = [input_dim] + list(hidden_dims)
    params = []
    for i in range(len(dims) - 1):
        din, dout = dims[i], dims[i + 1]
        kparam, ka, kb, kc, kd = jax.random.split(kparam, 5)
        scale_l = 1.0 / jnp.sqrt(R * din)
        scale_s = 1.0 / jnp.sqrt(din)
        # nn.Linear(R*din, dout): weight (dout, R*din) -> (R, din, dout)
        w_lin = jax.random.normal(ka, (dout, R * din), jnp.float32) * scale_l
        wl = jnp.transpose(w_lin.reshape(dout, R, din), (1, 2, 0))
        bl = (jax.random.normal(kb, (dout,), jnp.float32) * scale_l)[None, :]
        # nn.Linear(din, dout) self_loop: weight (dout, din) -> (din, dout)
        ws = (jax.random.normal(kc, (dout, din), jnp.float32) * scale_s).T
        bs = (jax.random.normal(kd, (dout,), jnp.float32) * scale_s)[None, :]
        params.append((wl, bl, ws, bs))

    common = dict(num_relation=R, short_cut=True, concat_hidden=False)

    ref_node, ref_graph = gearnet_reference(
        node_input, edge_list, edge_weight, node2graph, G, params, **common)

    # 1) f32 operands: tight check against the pure-JAX reference.
    node_f32, graph_f32 = gearnet_forward(
        node_input, edge_list, edge_weight, node2graph, G, params,
        compute_dtype=jnp.float32, **common)
    jax.block_until_ready((node_f32, graph_f32))
    assert node_f32.shape == (N, hidden_dims[-1])
    assert graph_f32.shape == (G, hidden_dims[-1])
    assert jnp.allclose(node_f32, ref_node, atol=1e-4, rtol=1e-4)
    assert jnp.allclose(graph_f32, ref_graph, atol=1e-3, rtol=1e-4)

    # 2) Small-tile config: exercises the multi-step (row x relation x K)
    #    accumulation grid and the tiled readout.
    node_t, graph_t = gearnet_forward(
        node_input, edge_list, edge_weight, node2graph, G, params,
        compute_dtype=jnp.float32, tm_cap=32, tk_cap=128, **common)
    jax.block_until_ready((node_t, graph_t))
    assert jnp.allclose(node_t, ref_node, atol=1e-4, rtol=1e-4)
    assert jnp.allclose(graph_t, ref_graph, atol=1e-3, rtol=1e-4)

    # 3) Default bf16 MXU operands (f32 accumulation): loose relative check.
    node_bf, graph_bf = gearnet_forward(
        node_input, edge_list, edge_weight, node2graph, G, params, **common)
    jax.block_until_ready((node_bf, graph_bf))

    def _rel_err(a, b):
        return float(jnp.linalg.norm(a - b) / (jnp.linalg.norm(b) + 1e-6))

    assert _rel_err(node_bf, ref_node) < 3e-2
    assert _rel_err(graph_bf, ref_graph) < 3e-2

    print("KERNEL_OK")
</pallas_src>

<mosaic_0001>
module attributes {stable_mosaic.version = 11 : i64} {
  func.func @_layer_kernel(%arg0: i32, %arg1: i32, %arg2: i32, %arg3: memref<1x256x256xf32, #tpu.memory_space<vmem>>, %arg4: memref<256x128xf32, #tpu.memory_space<vmem>>, %arg5: memref<1x128x128xf32, #tpu.memory_space<vmem>>, %arg6: memref<1x128xf32, #tpu.memory_space<vmem>>, %arg7: memref<256x128xf32, #tpu.memory_space<vmem>>, %arg8: memref<256x128xf32, #tpu.memory_space<vmem>>, %arg9: memref<256x128xf32, #tpu.memory_space<vmem>>) attributes {dimension_semantics = [#tpu.dimension_semantics<parallel>, #tpu.dimension_semantics<arbitrary>, #tpu.dimension_semantics<arbitrary>], iteration_bounds = array<i64: 1, 5, 1>, scalar_prefetch = 0 : i64, scratch_operands = 2 : i64, tpu.core_type = #tpu.core_type<tc>, window_params = [{transform_indices = @transform_0, window_bounds = array<i64: 1, 256, 256>}, {transform_indices = @transform_1, window_bounds = array<i64: 256, 128>}, {transform_indices = @transform_2, window_bounds = array<i64: 1, 128, 128>}, {pipeline_mode = #tpu.pipeline_mode<synchronous>, transform_indices = @transform_3, window_bounds = array<i64: 1, 128>}, {transform_indices = @transform_4, window_bounds = array<i64: 256, 128>}]} {
    %c0_i32 = arith.constant 0 : i32
    %0 = arith.cmpi eq, %arg1, %c0_i32 : i32
    %c0_i32_0 = arith.constant 0 : i32
    %1 = arith.cmpi eq, %arg2, %c0_i32_0 : i32
    %2 = arith.andi %0, %1 : i1
    %3 = arith.extui %2 : i1 to i32
    %c0_i32_1 = arith.constant 0 : i32
    %4 = arith.cmpi ne, %3, %c0_i32_1 : i32
    scf.if %4 {
      %cst_16 = arith.constant 0.000000e+00 : f32
      %23 = vector.broadcast %cst_16 : f32 to vector<256x128xf32>
      %c0_17 = arith.constant 0 : index
      %c0_18 = arith.constant 0 : index
      %24 = vector.load %arg8[%c0_17, %c0_18] : memref<256x128xf32, #tpu.memory_space<vmem>>, vector<256x128xf32>
      tpu.vector_store %arg8[%c0_17, %c0_18], %23 {strides = array<i32>} : memref<256x128xf32, #tpu.memory_space<vmem>>, vector<256x128xf32>,
    } else {
    }
    %c0_i32_2 = arith.constant 0 : i32
    %5 = arith.cmpi eq, %arg2, %c0_i32_2 : i32
    %6 = arith.extui %5 : i1 to i32
    %c0_i32_3 = arith.constant 0 : i32
    %7 = arith.cmpi ne, %6, %c0_i32_3 : i32
    scf.if %7 {
      %cst_16 = arith.constant 0.000000e+00 : f32
      %23 = vector.broadcast %cst_16 : f32 to vector<256x128xf32>
      %c0_17 = arith.constant 0 : index
      %c0_18 = arith.constant 0 : index
      %24 = vector.load %arg9[%c0_17, %c0_18] : memref<256x128xf32, #tpu.memory_space<vmem>>, vector<256x128xf32>
      tpu.vector_store %arg9[%c0_17, %c0_18], %23 {strides = array<i32>} : memref<256x128xf32, #tpu.memory_space<vmem>>, vector<256x128xf32>,
    } else {
    }
    %c0 = arith.constant 0 : index
    %c0_4 = arith.constant 0 : index
    %8 = vector.load %arg9[%c0, %c0_4] : memref<256x128xf32, #tpu.memory_space<vmem>>, vector<256x128xf32>
    %c0_5 = arith.constant 0 : index
    %c0_6 = arith.constant 0 : index
    %c0_7 = arith.constant 0 : index
    %9 = vector.load %arg3[%c0_5, %c0_6, %c0_7] : memref<1x256x256xf32, #tpu.memory_space<vmem>>, vector<1x256x256xf32>
    %10 = vector.shape_cast %9 : vector<1x256x256xf32> to vector<256x256xf32>
    %c0_8 = arith.constant 0 : index
    %c0_9 = arith.constant 0 : index
    %11 = vector.load %arg4[%c0_8, %c0_9] : memref<256x128xf32, #tpu.memory_space<vmem>>, vector<256x128xf32>
    %cst = arith.constant dense<0.000000e+00> : vector<256x128xf32>
    %12 = tpu.matmul %10, %11, %cst {dimension_numbers = #tpu.dot_dimension_numbers<[1], [0], [0], [1], [0, 0, 1, 1], [], []>} : vector<256x256xf32>, vector<256x128xf32>, vector<256x128xf32> -> vector<256x128xf32>
    %13 = arith.addf %8, %12 : vector<256x128xf32>
    %c0_10 = arith.constant 0 : index
    %c0_11 = arith.constant 0 : index
    %14 = vector.load %arg9[%c0_10, %c0_11] : memref<256x128xf32, #tpu.memory_space<vmem>>, vector<256x128xf32>
    tpu.vector_store %arg9[%c0_10, %c0_11], %13 {strides = array<i32>} : memref<256x128xf32, #tpu.memory_space<vmem>>, vector<256x128xf32>,
    %c0_i32_12 = arith.constant 0 : i32
    %15 = arith.cmpi eq, %arg2, %c0_i32_12 : i32
    %16 = arith.extui %15 : i1 to i32
    %c0_i32_13 = arith.constant 0 : i32
    %17 = arith.cmpi ne, %16, %c0_i32_13 : i32
    scf.if %17 {
      %c0_16 = arith.constant 0 : index
      %c0_17 = arith.constant 0 : index
      %23 = vector.load %arg8[%c0_16, %c0_17] : memref<256x128xf32, #tpu.memory_space<vmem>>, vector<256x128xf32>
      %c0_18 = arith.constant 0 : index
      %c0_19 = arith.constant 0 : index
      %24 = vector.load %arg9[%c0_18, %c0_19] : memref<256x128xf32, #tpu.memory_space<vmem>>, vector<256x128xf32>
      %c0_20 = arith.constant 0 : index
      %c0_21 = arith.constant 0 : index
      %c0_22 = arith.constant 0 : index
      %25 = vector.load %arg5[%c0_20, %c0_21, %c0_22] : memref<1x128x128xf32, #tpu.memory_space<vmem>>, vector<1x128x128xf32>
      %26 = vector.shape_cast %25 : vector<1x128x128xf32> to vector<128x128xf32>
      %cst_23 = arith.constant dense<0.000000e+00> : vector<256x128xf32>
      %27 = tpu.matmul %24, %26, %cst_23 {dimension_numbers = #tpu.dot_dimension_numbers<[1], [0], [0], [1], [0, 0, 1, 1], [], []>} : vector<256x128xf32>, vector<128x128xf32>, vector<256x128xf32> -> vector<256x128xf32>
      %28 = arith.addf %23, %27 : vector<256x128xf32>
      %c0_24 = arith.constant 0 : index
      %c0_25 = arith.constant 0 : index
      %29 = vector.load %arg8[%c0_24, %c0_25] : memref<256x128xf32, #tpu.memory_space<vmem>>, vector<256x128xf32>
      tpu.vector_store %arg8[%c0_24, %c0_25], %28 {strides = array<i32>} : memref<256x128xf32, #tpu.memory_space<vmem>>, vector<256x128xf32>,
    } else {
    }
    %c4_i32 = arith.constant 4 : i32
    %18 = arith.cmpi eq, %arg1, %c4_i32 : i32
    %c0_i32_14 = arith.constant 0 : i32
    %19 = arith.cmpi eq, %arg2, %c0_i32_14 : i32
    %20 = arith.andi %18, %19 : i1
    %21 = arith.extui %20 : i1 to i32
    %c0_i32_15 = arith.constant 0 : i32
    %22 = arith.cmpi ne, %21, %c0_i32_15 : i32
    scf.if %22 {
      %c0_16 = arith.constant 0 : index
      %c0_17 = arith.constant 0 : index
      %23 = vector.load %arg8[%c0_16, %c0_17] : memref<256x128xf32, #tpu.memory_space<vmem>>, vector<256x128xf32>
      %c0_18 = arith.constant 0 : index
      %c0_19 = arith.constant 0 : index
      %24 = vector.load %arg6[%c0_18, %c0_19] : memref<1x128xf32, #tpu.memory_space<vmem>>, vector<1x128xf32>
      %25 = vector.broadcast %24 : vector<1x128xf32> to vector<256x128xf32>
      %26 = arith.addf %23, %25 : vector<256x128xf32>
      %cst_20 = arith.constant 0.000000e+00 : f32
      %27 = vector.broadcast %cst_20 : f32 to vector<256x128xf32>
      %28 = arith.maximumf %26, %27 : vector<256x128xf32>
      %c0_21 = arith.constant 0 : index
      %c0_22 = arith.constant 0 : index
      %29 = vector.load %arg9[%c0_21, %c0_22] : memref<256x128xf32, #tpu.memory_space<vmem>>, vector<256x128xf32>
      %30 = arith.addf %28, %29 : vector<256x128xf32>
      %c0_23 = arith.constant 0 : index
      %c0_24 = arith.constant 0 : index
      %31 = vector.load %arg7[%c0_23, %c0_24] : memref<256x128xf32, #tpu.memory_space<vmem>>, vector<256x128xf32>
      tpu.vector_store %arg7[%c0_23, %c0_24], %30 {strides = array<i32>} : memref<256x128xf32, #tpu.memory_space<vmem>>, vector<256x128xf32>,
    } else {
    }
    return
  }
  func.func @transform_0(%arg0: i32, %arg1: i32, %arg2: i32) -> (i32, i32, i32) {
    %c0_i32 = arith.constant 0 : i32
    return %arg1, %arg0, %arg2 : i32, i32, i32
  }
  func.func @transform_1(%arg0: i32, %arg1: i32, %arg2: i32) -> (i32, i32) {
    %c0_i32 = arith.constant 0 : i32
    %c0_i32_0 = arith.constant 0 : i32
    return %arg2, %c0_i32 : i32, i32
  }
  func.func @transform_2(%arg0: i32, %arg1: i32, %arg2: i32) -> (i32, i32, i32) {
    %c0_i32 = arith.constant 0 : i32
    %c0_i32_0 = arith.constant 0 : i32
    %c0_i32_1 = arith.constant 0 : i32
    return %arg1, %c0_i32, %c0_i32_0 : i32, i32, i32
  }
  func.func @transform_3(%arg0: i32, %arg1: i32, %arg2: i32) -> (i32, i32) {
    %c0_i32 = arith.constant 0 : i32
    %c0_i32_0 = arith.constant 0 : i32
    %c0_i32_1 = arith.constant 0 : i32
    return %c0_i32, %c0_i32_0 : i32, i32
  }
  func.func @transform_4(%arg0: i32, %arg1: i32, %arg2: i32) -> (i32, i32) {
    %c0_i32 = arith.constant 0 : i32
    %c0_i32_0 = arith.constant 0 : i32
    return %arg0, %c0_i32 : i32, i32
  }
}

</mosaic_0001>

<llo_original>
// kernel: tpu_custom_call.1
$region0: #{tpu_custom_call.1}
  #allocation0 [shape = 'u32[]', space=smem, size = 0x4, offset = 0x4, fixed_abs, tag = 'smem constant byte address 0x4 - core index']
  #allocation1 [shape = 'u32[144,128]{1,0:T(1,128)}', space=vmem, size = 0x12000, scoped, tag = 'internal scratch']
  #allocation2 [shape = 'f32[256,128]{1,0:T(8,128)}', space=vmem, size = 0x20000, scoped, tag = 'scratch operand']
  #allocation3 [shape = 'f32[256,128]{1,0:T(8,128)}', space=vmem, size = 0x20000, scoped, tag = 'scratch operand']
  %s0 = inlined_call_operand.hbm [shape: f32[5,256,256], index: 0, kind: input, shape index: {}]
  %s1 = inlined_call_operand.hbm [shape: f32[256,128], index: 1, kind: input, shape index: {}]
  %s2 = inlined_call_operand.hbm [shape: f32[5,128,128], index: 2, kind: input, shape index: {}]
  %s3 = inlined_call_operand.hbm [shape: f32[1,128], index: 3, kind: input, shape index: {}]
  %s4 = inlined_call_operand.hbm [shape: f32[256,128], index: 4, kind: output, shape index: {}]
  %s5 = sld [smem:[#allocation0]]
  $region81: #{tpu_custom_call.1} parent=0
    _
  %s7 = ssub.s32 1, %s5
  %s8 = scalar_select 0, %s7, %s5
  $region1: #{tpu_custom_call.1} parent=0
    #allocation4 [shape = 'u8[524288]{0}', space=vmem, size = 0x80000, scoped, tag = 'input window, operand 0']
    #allocation5 [shape = 's32[2]{0}', space=sflag, size = 0x8, scoped, tag = 'scoped memory for tpu_custom_call.1']
    #allocation6 [shape = 's32[2]{0}', space=sflag, size = 0x8, scoped, tag = 'scoped memory for tpu_custom_call.1']
    #allocation7 [shape = 'u8[131072]{0}', space=vmem, size = 0x20000, scoped, tag = 'input window, operand 1, single buffered']
    #allocation8 [shape = 's32[1]{0}', space=sflag, size = 0x4, scoped, tag = 'scoped memory for tpu_custom_call.1']
    #allocation9 [shape = 'u8[131072]{0}', space=vmem, size = 0x20000, scoped, tag = 'input window, operand 2']
    #allocation10 [shape = 'u8[512]{0}', space=vmem, size = 0x400, scoped, tag = 'input window, operand 3, single buffered']
    #allocation11 [shape = 'u8[131072]{0}', space=vmem, size = 0x20000, scoped, tag = 'output window, operand 0, single buffered']
    %9 = vsyncpa [#allocation5], 0
    %s10 = scalar_lea.sflag [#allocation5], 1
    %11 = vsyncpa %s10, 0
    %12 = vsyncpa [#allocation8], 0
    %13 = vsyncpa [#allocation6], 0
    loop: start=0, step=1, limit=7
    $region2: #{tpu_custom_call.1} parent=1 // loop_pre_header
      _
    $region3: #{tpu_custom_call.1} parent=1 // loop_header
      %s15 = sphi 0, %s19
      %p16 = scmp.ge.s32.totalorder %s15, 7
      %s22 = sphi 0, %s41
      %s23 = sphi 0, %s37
      %s24 = sphi 0, %s33
      %s25 = sphi 0, %s22
      %s26 = sphi 0, %s23
      %s27 = sphi 0, %s24
      %s28 = sphi 0, %s25
      %s29 = sphi 0, %s26
      %s30 = sphi 0, %s27
      %s48 = sphi 0, %s50
      %s51 = sphi 0, %s48
      %s52 = sphi 0, %s51
      %s68 = sphi 0, %s52
      %s74 = sphi 0, %s76
      %s77 = sphi 0, %s74
      %s78 = sphi 0, %s77
      %s94 = sphi 0, %s78
      %s100 = sphi 0, %s102
      %s103 = sphi 0, %s100
      %s104 = sphi 0, %s103
      %s120 = sphi 0, %s104
      %s124 = sphi 0, %s124
      %s126 = sphi 0, %s124
      %s127 = sphi 0, %s126
      %s141 = sphi 0, %s127
      %s147 = sphi 0, %s149
      %s150 = sphi 0, %s147
      %s151 = sphi 0, %s150
      %s167 = sphi 0, %s151
    $region4: #{tpu_custom_call.1} parent=1 // loop_header_branch
      %18 = sbr.rel (%p16) target = $region8
    $region5: #{tpu_custom_call.1} parent=1 // loop_body
      %s20 = ssub.s32 %s15, 1
      %s21 = ssub.s32 %s15, 2
      %s31 = sadd.s32 1, %s24
      %p32 = scmp.ge.s32.totalorder %s31, 1
      %s33 = scalar_select %p32, 0, %s31
      %s34 = sadd.s32 1, %s23
      %s35 = scalar_select %p32, %s34, %s23
      %p36 = scmp.ge.s32.totalorder %s35, 5
      %s37 = scalar_select %p36, 0, %s35
      %s38 = sadd.s32 1, %s22
      %s39 = scalar_select %p36, %s38, %s22
      %p40 = scmp.ge.s32.totalorder %s39, 1
      %s41 = scalar_select %p40, 0, %s39
      %s42 = ssub.s32 %s23, %s37
      %s43 = ssub.s32 %s22, %s41
      %s44 = sor.u32 %s42, %s43
      %s45 = ssub.s32 %s24, %s33
      %s46 = sor.u32 %s44, %s45
      %p47 = scmp.eq.s32.totalorder %s46, 0
      %s49 = sadd.s32 %s48, 1
      %s50 = scalar_select %p47, %s48, %s49
      %p53 = pneg %p47
      %p54 = scmp.eq.s32.totalorder %s15, 4
      %p55 = por %p53, %p54
      %p56 = scmp.ne.s32.totalorder %s48, %s51
      %p57 = scmp.eq.s32.totalorder %s15, 0
      %p58 = por %p56, %p57
      %p59 = scmp.ne.s32.totalorder %s48, %s51
      %p60 = scmp.eq.s32.totalorder %s20, 4
      %p61 = por %p59, %p60
      %p62 = scmp.ne.s32.totalorder %s51, %s52
      %p63 = scmp.eq.s32.totalorder %s20, 0
      %p64 = por %p62, %p63
      %p65 = scmp.ne.s32.totalorder %s51, %s52
      %p66 = scmp.eq.s32.totalorder %s21, 4
      %p67 = por %p65, %p66
      %p69 = scmp.ne.s32.totalorder %s52, %s68
      %p70 = scmp.eq.s32.totalorder %s21, 0
      %p71 = por %p69, %p70
      %s72 = ssub.s32 %s24, %s33
      %p73 = scmp.eq.s32.totalorder %s72, 0
      %s75 = sadd.s32 %s74, 1
      %s76 = scalar_select %p73, %s74, %s75
      %p79 = pneg %p73
      %p80 = scmp.eq.s32.totalorder %s15, 4
      %p81 = por %p79, %p80
      %p82 = scmp.ne.s32.totalorder %s74, %s77
      %p83 = scmp.eq.s32.totalorder %s15, 0
      %p84 = por %p82, %p83
      %p85 = scmp.ne.s32.totalorder %s74, %s77
      %p86 = scmp.eq.s32.totalorder %s20, 4
      %p87 = por %p85, %p86
      %p88 = scmp.ne.s32.totalorder %s77, %s78
      %p89 = scmp.eq.s32.totalorder %s20, 0
      %p90 = por %p88, %p89
      %p91 = scmp.ne.s32.totalorder %s77, %s78
      %p92 = scmp.eq.s32.totalorder %s21, 4
      %p93 = por %p91, %p92
      %p95 = scmp.ne.s32.totalorder %s78, %s94
      %p96 = scmp.eq.s32.totalorder %s21, 0
      %p97 = por %p95, %p96
      %s98 = ssub.s32 %s23, %s37
      %p99 = scmp.eq.s32.totalorder %s98, 0
      %s101 = sadd.s32 %s100, 1
      %s102 = scalar_select %p99, %s100, %s101
      %p105 = pneg %p99
      %p106 = scmp.eq.s32.totalorder %s15, 4
      %p107 = por %p105, %p106
      %p108 = scmp.ne.s32.totalorder %s100, %s103
      %p109 = scmp.eq.s32.totalorder %s15, 0
      %p110 = por %p108, %p109
      %p111 = scmp.ne.s32.totalorder %s100, %s103
      %p112 = scmp.eq.s32.totalorder %s20, 4
      %p113 = por %p111, %p112
      %p114 = scmp.ne.s32.totalorder %s103, %s104
      %p115 = scmp.eq.s32.totalorder %s20, 0
      %p116 = por %p114, %p115
      %p117 = scmp.ne.s32.totalorder %s103, %s104
      %p118 = scmp.eq.s32.totalorder %s21, 4
      %p119 = por %p117, %p118
      %p121 = scmp.ne.s32.totalorder %s104, %s120
      %p122 = scmp.eq.s32.totalorder %s21, 0
      %p123 = por %p121, %p122
      %s125 = sadd.s32 %s124, 1
      %p128 = scmp.eq.s32.totalorder %s15, 4
      %p129 = scmp.ne.s32.totalorder %s124, %s126
      %p130 = scmp.eq.s32.totalorder %s15, 0
      %p131 = por %p129, %p130
      %p132 = scmp.ne.s32.totalorder %s124, %s126
      %p133 = scmp.eq.s32.totalorder %s20, 4
      %p134 = por %p132, %p133
      %p135 = scmp.ne.s32.totalorder %s126, %s127
      %p136 = scmp.eq.s32.totalorder %s20, 0
      %p137 = por %p135, %p136
      %p138 = scmp.ne.s32.totalorder %s126, %s127
      %p139 = scmp.eq.s32.totalorder %s21, 4
      %p140 = por %p138, %p139
      %p142 = scmp.ne.s32.totalorder %s127, %s141
      %p143 = scmp.eq.s32.totalorder %s21, 0
      %p144 = por %p142, %p143
      %s145 = ssub.s32 %s22, %s41
      %p146 = scmp.eq.s32.totalorder %s145, 0
      %s148 = sadd.s32 %s147, 1
      %s149 = scalar_select %p146, %s147, %s148
      %p152 = pneg %p146
      %p153 = scmp.eq.s32.totalorder %s15, 4
      %p154 = por %p152, %p153
      %p155 = scmp.ne.s32.totalorder %s147, %s150
      %p156 = scmp.eq.s32.totalorder %s15, 0
      %p157 = por %p155, %p156
      %p158 = scmp.ne.s32.totalorder %s147, %s150
      %p159 = scmp.eq.s32.totalorder %s20, 4
      %p160 = por %p158, %p159
      %p161 = scmp.ne.s32.totalorder %s150, %s151
      %p162 = scmp.eq.s32.totalorder %s20, 0
      %p163 = por %p161, %p162
      %p164 = scmp.ne.s32.totalorder %s150, %s151
      %p165 = scmp.eq.s32.totalorder %s21, 4
      %p166 = por %p164, %p165
      %p168 = scmp.ne.s32.totalorder %s151, %s167
      %p169 = scmp.eq.s32.totalorder %s21, 0
      %p170 = por %p168, %p169
      %p171 = scmp.le.s32.totalorder 1, %s15
      %p172 = scmp.lt.s32.totalorder %s15, 6
      %p173 = pnand %p171, %p172
      %p174 = pneg %p173
      // Predicated region
      $region9: #{tpu_custom_call.1} parent=5 // pred_check
        _
      $region10: #{tpu_custom_call.1} parent=5 // pred_check_branch
        %176 = sbr.rel (%p173) target = $region12
      $region11: #{tpu_custom_call.1} parent=5 // pred_region
        %s177 = ssub.s32 %s15, 1
        // Predicated region
        $region13: #{tpu_custom_call.1} parent=11 // pred_check
          %p178 = pneg %p90
        $region14: #{tpu_custom_call.1} parent=11 // pred_check_branch
          %180 = sbr.rel (%p178) target = $region16
        $region15: #{tpu_custom_call.1} parent=11 // pred_region
          %s181 = smul.u32 32, %s27
          %s183 = ssub.s32 4096, 4096
          %184 = vsyncadd [#allocation8], %s183
          %s185 = smul.addr %s181, 128
          %s186 = scalar_lea.hbm %s1, %s185
          %s187 = sshll.u32 [#allocation7], 4
          %s188 = int_to_ptr.vmem [resolvable:$true] %s187
          %193 = dma.hbm_to_vmem [thread:$0]  %s186, 4096, %s188, [#allocation8], 128, 128, 8
        $region16: #{tpu_custom_call.1} parent=11 // pred_fallthru
          _
        // Predicated region
        $region17: #{tpu_custom_call.1} parent=11 // pred_check
          %p194 = pneg %p137
        $region18: #{tpu_custom_call.1} parent=11 // pred_check_branch
          %196 = sbr.rel (%p194) target = $region20
        $region19: #{tpu_custom_call.1} parent=11 // pred_region
          %s198 = ssub.s32 16, 16
          %199 = vsyncadd [#allocation8], %s198
          %s201 = sshll.u32 [#allocation10], 4
          %s202 = int_to_ptr.vmem [resolvable:$true] %s201
          %204 = dma.hbm_to_vmem [thread:$0]  %s3, 16, %s202, [#allocation8]
        $region20: #{tpu_custom_call.1} parent=11 // pred_fallthru
          _
      $region12: #{tpu_custom_call.1} parent=5 // pred_fallthru
        _
      %p205 = scmp.lt.s32.totalorder %s15, 5
      // Predicated region
      $region21: #{tpu_custom_call.1} parent=5 // pred_check
        %p206 = pneg %p205
      $region22: #{tpu_custom_call.1} parent=5 // pred_check_branch
        %208 = sbr.rel (%p206) target = $region24
      $region23: #{tpu_custom_call.1} parent=5 // pred_region
        // Predicated region
        $region25: #{tpu_custom_call.1} parent=23 // pred_check
          %p209 = pneg %p58
        $region26: #{tpu_custom_call.1} parent=23 // pred_check_branch
          %211 = sbr.rel (%p209) target = $region28
        $region27: #{tpu_custom_call.1} parent=23 // pred_region
          %s212 = sand.u32 %s15, 1
          %s213 = scalar_lea.sflag [#allocation5], %s212
          %s214 = sand.u32 %s48, 1
          %s215 = smul.addr %s214, 512
          %s216 = scalar_lea.vmem [#allocation4], %s215
          %s217 = smul.u32 32, %s22
          %s218 = smul.u32 2, %s24
          %s220 = ssub.s32 8192, 8192
          %221 = vsyncadd %s213, %s220
          %s222 = smul.addr %s217, 2
          %s223 = sadd.s32 %s218, %s222
          %s224 = smul.addr %s23, 64
          %s225 = sadd.s32 %s223, %s224
          %s226 = smul.addr %s225, 128
          %s227 = scalar_lea.hbm %s0, %s226
          %s228 = sshll.u32 %s216, 4
          %s229 = int_to_ptr.vmem [resolvable:$true] %s228
          %234 = dma.hbm_to_vmem [thread:$0]  %s227, 8192, %s229, %s213, 256, 256, 16
        $region28: #{tpu_custom_call.1} parent=23 // pred_fallthru
          _
        // Predicated region
        $region29: #{tpu_custom_call.1} parent=23 // pred_check
          %p235 = pneg %p110
        $region30: #{tpu_custom_call.1} parent=23 // pred_check_branch
          %237 = sbr.rel (%p235) target = $region32
        $region31: #{tpu_custom_call.1} parent=23 // pred_region
          %s238 = sand.u32 %s15, 1
          %s239 = scalar_lea.sflag [#allocation5], %s238
          %s240 = sand.u32 %s100, 1
          %s241 = smul.addr %s240, 128
          %s242 = scalar_lea.vmem [#allocation9], %s241
          %s244 = ssub.s32 2048, 2048
          %245 = vsyncadd %s239, %s244
          %s246 = smul.addr %s23, 16
          %s247 = smul.addr %s246, 128
          %s248 = scalar_lea.hbm %s2, %s247
          %s249 = sshll.u32 %s242, 4
          %s250 = int_to_ptr.vmem [resolvable:$true] %s249
          %255 = dma.hbm_to_vmem [thread:$0]  %s248, 2048, %s250, %s239, 128, 128, 8
        $region32: #{tpu_custom_call.1} parent=23 // pred_fallthru
          _
      $region24: #{tpu_custom_call.1} parent=5 // pred_fallthru
        _
      %p256 = scmp.le.s32.totalorder 1, %s15
      %p257 = scmp.lt.s32.totalorder %s15, 6
      %p258 = pnand %p256, %p257
      %p259 = pneg %p258
      // Predicated region
      $region33: #{tpu_custom_call.1} parent=5 // pred_check
        _
      $region34: #{tpu_custom_call.1} parent=5 // pred_check_branch
        %261 = sbr.rel (%p258) target = $region36
      $region35: #{tpu_custom_call.1} parent=5 // pred_region
        %s262 = ssub.s32 %s15, 1
        %s263 = sand.u32 %s20, 1
        %s264 = scalar_lea.sflag [#allocation5], %s263
        %s265 = sand.u32 %s51, 1
        %s266 = smul.addr %s265, 512
        %s267 = scalar_lea.vmem [#allocation4], %s266
        // Predicated region
        $region37: #{tpu_custom_call.1} parent=35 // pred_check
          %p268 = pneg %p64
        $region38: #{tpu_custom_call.1} parent=35 // pred_check_branch
          %270 = sbr.rel (%p268) target = $region40
        $region39: #{tpu_custom_call.1} parent=35 // pred_region
          %271 = dma.done %s264, 8192
        $region40: #{tpu_custom_call.1} parent=35 // pred_fallthru
          _
        // Predicated region
        $region41: #{tpu_custom_call.1} parent=35 // pred_check
          %p272 = pneg %p90
        $region42: #{tpu_custom_call.1} parent=35 // pred_check_branch
          %274 = sbr.rel (%p272) target = $region44
        $region43: #{tpu_custom_call.1} parent=35 // pred_region
          %275 = dma.done [#allocation8], 4096
        $region44: #{tpu_custom_call.1} parent=35 // pred_fallthru
          _
        %s276 = sand.u32 %s20, 1
        %s277 = scalar_lea.sflag [#allocation5], %s276
        %s278 = sand.u32 %s103, 1
        %s279 = smul.addr %s278, 128
        %s280 = scalar_lea.vmem [#allocation9], %s279
        // Predicated region
        $region45: #{tpu_custom_call.1} parent=35 // pred_check
          %p281 = pneg %p116
        $region46: #{tpu_custom_call.1} parent=35 // pred_check_branch
          %283 = sbr.rel (%p281) target = $region48
        $region47: #{tpu_custom_call.1} parent=35 // pred_region
          %284 = dma.done %s277, 2048
        $region48: #{tpu_custom_call.1} parent=35 // pred_fallthru
          _
        // Predicated region
        $region49: #{tpu_custom_call.1} parent=35 // pred_check
          %p285 = pneg %p137
        $region50: #{tpu_custom_call.1} parent=35 // pred_check_branch
          %287 = sbr.rel (%p285) target = $region52
        $region51: #{tpu_custom_call.1} parent=35 // pred_region
          %288 = dma.done [#allocation8], 16
        $region52: #{tpu_custom_call.1} parent=35 // pred_fallthru
          _
        %s289 = sand.u32 %s20, 1
        %s290 = scalar_lea.sflag [#allocation5], %s289
        %s291 = sand.u32 %s51, 1
        %s292 = smul.addr %s291, 512
        %s293 = scalar_lea.vmem [#allocation4], %s292
        %p294 = pneg %p64
        %p295 = pneg %p61
        %p296 = pneg %p90
        %p297 = pneg %p87
        %s298 = sand.u32 %s20, 1
        %s299 = scalar_lea.sflag [#allocation5], %s298
        %s300 = sand.u32 %s103, 1
        %s301 = smul.addr %s300, 128
        %s302 = scalar_lea.vmem [#allocation9], %s301
        %p303 = pneg %p116
        %p304 = pneg %p113
        %p305 = pneg %p137
        %p306 = pneg %p134
        %p307 = pneg %p163
        %p308 = pneg %p160
        %s309 = smul.u32 32, %s25
        %s310 = smul.u32 2, %s27
        %s311 = smul.u32 32, %s27
        %s312 = smul.u32 32, %s25
        %p313 = scmp.eq.s32.totalorder %s26, 0
        %p314 = scmp.eq.s32.totalorder %s27, 0
        %p315 = pnand %p313, %p314
        %p316 = pneg %p315
        // Predicated region
        $region53: #{tpu_custom_call.1} parent=35 // pred_check
          _
        $region54: #{tpu_custom_call.1} parent=35 // pred_check_branch
          %318 = sbr.rel (%p315) target = $region56
        $region55: #{tpu_custom_call.1} parent=35 // pred_region
          %319 = vst [vmem:[#allocation2] sm:$0xff] 0.0
          %320 = vst [vmem:[#allocation2 + $0x8] sm:$0xff] 0.0
          %321 = vst [vmem:[#allocation2 + $0x10] sm:$0xff] 0.0
          %322 = vst [vmem:[#allocation2 + $0x18] sm:$0xff] 0.0
          %323 = vst [vmem:[#allocation2 + $0x20] sm:$0xff] 0.0
          %324 = vst [vmem:[#allocation2 + $0x28] sm:$0xff] 0.0
          %325 = vst [vmem:[#allocation2 + $0x30] sm:$0xff] 0.0
          %326 = vst [vmem:[#allocation2 + $0x38] sm:$0xff] 0.0
          %327 = vst [vmem:[#allocation2 + $0x40] sm:$0xff] 0.0
          %328 = vst [vmem:[#allocation2 + $0x48] sm:$0xff] 0.0
          %329 = vst [vmem:[#allocation2 + $0x50] sm:$0xff] 0.0
          %330 = vst [vmem:[#allocation2 + $0x58] sm:$0xff] 0.0
          %331 = vst [vmem:[#allocation2 + $0x60] sm:$0xff] 0.0
          %332 = vst [vmem:[#allocation2 + $0x68] sm:$0xff] 0.0
          %333 = vst [vmem:[#allocation2 + $0x70] sm:$0xff] 0.0
          %334 = vst [vmem:[#allocation2 + $0x78] sm:$0xff] 0.0
          %335 = vst [vmem:[#allocation2 + $0x80] sm:$0xff] 0.0
          %336 = vst [vmem:[#allocation2 + $0x88] sm:$0xff] 0.0
          %337 = vst [vmem:[#allocation2 + $0x90] sm:$0xff] 0.0
          %338 = vst [vmem:[#allocation2 + $0x98] sm:$0xff] 0.0
          %339 = vst [vmem:[#allocation2 + $0xa0] sm:$0xff] 0.0
          %340 = vst [vmem:[#allocation2 + $0xa8] sm:$0xff] 0.0
          %341 = vst [vmem:[#allocation2 + $0xb0] sm:$0xff] 0.0
          %342 = vst [vmem:[#allocation2 + $0xb8] sm:$0xff] 0.0
          %343 = vst [vmem:[#allocation2 + $0xc0] sm:$0xff] 0.0
          %344 = vst [vmem:[#allocation2 + $0xc8] sm:$0xff] 0.0
          %345 = vst [vmem:[#allocation2 + $0xd0] sm:$0xff] 0.0
          %346 = vst [vmem:[#allocation2 + $0xd8] sm:$0xff] 0.0
          %347 = vst [vmem:[#allocation2 + $0xe0] sm:$0xff] 0.0
          %348 = vst [vmem:[#allocation2 + $0xe8] sm:$0xff] 0.0
          %349 = vst [vmem:[#allocation2 + $0xf0] sm:$0xff] 0.0
          %350 = vst [vmem:[#allocation2 + $0xf8] sm:$0xff] 0.0
        $region56: #{tpu_custom_call.1} parent=35 // pred_fallthru
          _
        // Predicated region
        $region57: #{tpu_custom_call.1} parent=35 // pred_check
          %p351 = pneg %p314
        $region58: #{tpu_custom_call.1} parent=35 // pred_check_branch
          %353 = sbr.rel (%p351) target = $region60
        $region59: #{tpu_custom_call.1} parent=35 // pred_region
          %354 = vst [vmem:[#allocation3] sm:$0xff] 0.0
          %355 = vst [vmem:[#allocation3 + $0x8] sm:$0xff] 0.0
          %356 = vst [vmem:[#allocation3 + $0x10] sm:$0xff] 0.0
          %357 = vst [vmem:[#allocation3 + $0x18] sm:$0xff] 0.0
          %358 = vst [vmem:[#allocation3 + $0x20] sm:$0xff] 0.0
          %359 = vst [vmem:[#allocation3 + $0x28] sm:$0xff] 0.0
          %360 = vst [vmem:[#allocation3 + $0x30] sm:$0xff] 0.0
          %361 = vst [vmem:[#allocation3 + $0x38] sm:$0xff] 0.0
          %362 = vst [vmem:[#allocation3 + $0x40] sm:$0xff] 0.0
          %363 = vst [vmem:[#allocation3 + $0x48] sm:$0xff] 0.0
          %364 = vst [vmem:[#allocation3 + $0x50] sm:$0xff] 0.0
          %365 = vst [vmem:[#allocation3 + $0x58] sm:$0xff] 0.0
          %366 = vst [vmem:[#allocation3 + $0x60] sm:$0xff] 0.0
          %367 = vst [vmem:[#allocation3 + $0x68] sm:$0xff] 0.0
          %368 = vst [vmem:[#allocation3 + $0x70] sm:$0xff] 0.0
          %369 = vst [vmem:[#allocation3 + $0x78] sm:$0xff] 0.0
          %370 = vst [vmem:[#allocation3 + $0x80] sm:$0xff] 0.0
          %371 = vst [vmem:[#allocation3 + $0x88] sm:$0xff] 0.0
          %372 = vst [vmem:[#allocation3 + $0x90] sm:$0xff] 0.0
          %373 = vst [vmem:[#allocation3 + $0x98] sm:$0xff] 0.0
          %374 = vst [vmem:[#allocation3 + $0xa0] sm:$0xff] 0.0
          %375 = vst [vmem:[#allocation3 + $0xa8] sm:$0xff] 0.0
          %376 = vst [vmem:[#allocation3 + $0xb0] sm:$0xff] 0.0
          %377 = vst [vmem:[#allocation3 + $0xb8] sm:$0xff] 0.0
          %378 = vst [vmem:[#allocation3 + $0xc0] sm:$0xff] 0.0
          %379 = vst [vmem:[#allocation3 + $0xc8] sm:$0xff] 0.0
          %380 = vst [vmem:[#allocation3 + $0xd0] sm:$0xff] 0.0
          %381 = vst [vmem:[#allocation3 + $0xd8] sm:$0xff] 0.0
          %382 = vst [vmem:[#allocation3 + $0xe0] sm:$0xff] 0.0
          %383 = vst [vmem:[#allocation3 + $0xe8] sm:$0xff] 0.0
          %384 = vst [vmem:[#allocation3 + $0xf0] sm:$0xff] 0.0
          %385 = vst [vmem:[#allocation3 + $0xf8] sm:$0xff] 0.0
        $region60: #{tpu_custom_call.1} parent=35 // pred_fallthru
          _
        %v386 = vld [vmem:[#allocation3] sm:$0xff]
        %v387 = vld [vmem:[#allocation3 + $0x8] sm:$0xff]
        %v388 = vld [vmem:[#allocation3 + $0x10] sm:$0xff]
        %v389 = vld [vmem:[#allocation3 + $0x18] sm:$0xff]
        %v390 = vld [vmem:[#allocation3 + $0x20] sm:$0xff]
        %v391 = vld [vmem:[#allocation3 + $0x28] sm:$0xff]
        %v392 = vld [vmem:[#allocation3 + $0x30] sm:$0xff]
        %v393 = vld [vmem:[#allocation3 + $0x38] sm:$0xff]
        %v394 = vld [vmem:[#allocation3 + $0x40] sm:$0xff]
        %v395 = vld [vmem:[#allocation3 + $0x48] sm:$0xff]
        %v396 = vld [vmem:[#allocation3 + $0x50] sm:$0xff]
        %v397 = vld [vmem:[#allocation3 + $0x58] sm:$0xff]
        %v398 = vld [vmem:[#allocation3 + $0x60] sm:$0xff]
        %v399 = vld [vmem:[#allocation3 + $0x68] sm:$0xff]
        %v400 = vld [vmem:[#allocation3 + $0x70] sm:$0xff]
        %v401 = vld [vmem:[#allocation3 + $0x78] sm:$0xff]
        %v402 = vld [vmem:[#allocation3 + $0x80] sm:$0xff]
        %v403 = vld [vmem:[#allocation3 + $0x88] sm:$0xff]
        %v404 = vld [vmem:[#allocation3 + $0x90] sm:$0xff]
        %v405 = vld [vmem:[#allocation3 + $0x98] sm:$0xff]
        %v406 = vld [vmem:[#allocation3 + $0xa0] sm:$0xff]
        %v407 = vld [vmem:[#allocation3 + $0xa8] sm:$0xff]
        %v408 = vld [vmem:[#allocation3 + $0xb0] sm:$0xff]
        %v409 = vld [vmem:[#allocation3 + $0xb8] sm:$0xff]
        %v410 = vld [vmem:[#allocation3 + $0xc0] sm:$0xff]
        %v411 = vld [vmem:[#allocation3 + $0xc8] sm:$0xff]
        %v412 = vld [vmem:[#allocation3 + $0xd0] sm:$0xff]
        %v413 = vld [vmem:[#allocation3 + $0xd8] sm:$0xff]
        %v414 = vld [vmem:[#allocation3 + $0xe0] sm:$0xff]
        %v415 = vld [vmem:[#allocation3 + $0xe8] sm:$0xff]
        %v416 = vld [vmem:[#allocation3 + $0xf0] sm:$0xff]
        %v417 = vld [vmem:[#allocation3 + $0xf8] sm:$0xff]
        %v418 = vld [vmem:[%s267] sm:$0xff]
        %v419 = vld [vmem:[%s267 + $0x8] sm:$0xff]
        %v420 = vld [vmem:[%s267 + $0x10] sm:$0xff]
        %v421 = vld [vmem:[%s267 + $0x18] sm:$0xff]
        %v422 = vld [vmem:[%s267 + $0x20] sm:$0xff]
        %v423 = vld [vmem:[%s267 + $0x28] sm:$0xff]
        %v424 = vld [vmem:[%s267 + $0x30] sm:$0xff]
        %v425 = vld [vmem:[%s267 + $0x38] sm:$0xff]
        %v426 = vld [vmem:[%s267 + $0x40] sm:$0xff]
        %v427 = vld [vmem:[%s267 + $0x48] sm:$0xff]
        %v428 = vld [vmem:[%s267 + $0x50] sm:$0xff]
        %v429 = vld [vmem:[%s267 + $0x58] sm:$0xff]
        %v430 = vld [vmem:[%s267 + $0x60] sm:$0xff]
        %v431 = vld [vmem:[%s267 + $0x68] sm:$0xff]
        %v432 = vld [vmem:[%s267 + $0x70] sm:$0xff]
        %v433 = vld [vmem:[%s267 + $0x78] sm:$0xff]
        %v434 = vld [vmem:[%s267 + $0x80] sm:$0xff]
        %v435 = vld [vmem:[%s267 + $0x88] sm:$0xff]
        %v436 = vld [vmem:[%s267 + $0x90] sm:$0xff]
        %v437 = vld [vmem:[%s267 + $0x98] sm:$0xff]
        %v438 = vld [vmem:[%s267 + $0xa0] sm:$0xff]
        %v439 = vld [vmem:[%s267 + $0xa8] sm:$0xff]
        %v440 = vld [vmem:[%s267 + $0xb0] sm:$0xff]
        %v441 = vld [vmem:[%s267 + $0xb8] sm:$0xff]
        %v442 = vld [vmem:[%s267 + $0xc0] sm:$0xff]
        %v443 = vld [vmem:[%s267 + $0xc8] sm:$0xff]
        %v444 = vld [vmem:[%s267 + $0xd0] sm:$0xff]
        %v445 = vld [vmem:[%s267 + $0xd8] sm:$0xff]
        %v446 = vld [vmem:[%s267 + $0xe0] sm:$0xff]
        %v447 = vld [vmem:[%s267 + $0xe8] sm:$0xff]
        %v448 = vld [vmem:[%s267 + $0xf0] sm:$0xff]
        %v449 = vld [vmem:[%s267 + $0xf8] sm:$0xff]
        %v450 = vld [vmem:[%s267 + $0x100] sm:$0xff]
        %v451 = vld [vmem:[%s267 + $0x108] sm:$0xff]
        %v452 = vld [vmem:[%s267 + $0x110] sm:$0xff]
        %v453 = vld [vmem:[%s267 + $0x118] sm:$0xff]
        %v454 = vld [vmem:[%s267 + $0x120] sm:$0xff]
        %v455 = vld [vmem:[%s267 + $0x128] sm:$0xff]
        %v456 = vld [vmem:[%s267 + $0x130] sm:$0xff]
        %v457 = vld [vmem:[%s267 + $0x138] sm:$0xff]
        %v458 = vld [vmem:[%s267 + $0x140] sm:$0xff]
        %v459 = vld [vmem:[%s267 + $0x148] sm:$0xff]
        %v460 = vld [vmem:[%s267 + $0x150] sm:$0xff]
        %v461 = vld [vmem:[%s267 + $0x158] sm:$0xff]
        %v462 = vld [vmem:[%s267 + $0x160] sm:$0xff]
        %v463 = vld [vmem:[%s267 + $0x168] sm:$0xff]
        %v464 = vld [vmem:[%s267 + $0x170] sm:$0xff]
        %v465 = vld [vmem:[%s267 + $0x178] sm:$0xff]
        %v466 = vld [vmem:[%s267 + $0x180] sm:$0xff]
        %v467 = vld [vmem:[%s267 + $0x188] sm:$0xff]
        %v468 = vld [vmem:[%s267 + $0x190] sm:$0xff]
        %v469 = vld [vmem:[%s267 + $0x198] sm:$0xff]
        %v470 = vld [vmem:[%s267 + $0x1a0] sm:$0xff]
        %v471 = vld [vmem:[%s267 + $0x1a8] sm:$0xff]
        %v472 = vld [vmem:[%s267 + $0x1b0] sm:$0xff]
        %v473 = vld [vmem:[%s267 + $0x1b8] sm:$0xff]
        %v474 = vld [vmem:[%s267 + $0x1c0] sm:$0xff]
        %v475 = vld [vmem:[%s267 + $0x1c8] sm:$0xff]
        %v476 = vld [vmem:[%s267 + $0x1d0] sm:$0xff]
        %v477 = vld [vmem:[%s267 + $0x1d8] sm:$0xff]
        %v478 = vld [vmem:[%s267 + $0x1e0] sm:$0xff]
        %v479 = vld [vmem:[%s267 + $0x1e8] sm:$0xff]
        %v480 = vld [vmem:[%s267 + $0x1f0] sm:$0xff]
        %v481 = vld [vmem:[%s267 + $0x1f8] sm:$0xff]
        %v482 = vld [vmem:[#allocation7] sm:$0xff]
        %v483 = vld [vmem:[#allocation7 + $0x8] sm:$0xff]
        %v484 = vld [vmem:[#allocation7 + $0x10] sm:$0xff]
        %v485 = vld [vmem:[#allocation7 + $0x18] sm:$0xff]
        %v486 = vld [vmem:[#allocation7 + $0x20] sm:$0xff]
        %v487 = vld [vmem:[#allocation7 + $0x28] sm:$0xff]
        %v488 = vld [vmem:[#allocation7 + $0x30] sm:$0xff]
        %v489 = vld [vmem:[#allocation7 + $0x38] sm:$0xff]
        %v490 = vld [vmem:[#allocation7 + $0x40] sm:$0xff]
        %v491 = vld [vmem:[#allocation7 + $0x48] sm:$0xff]
        %v492 = vld [vmem:[#allocation7 + $0x50] sm:$0xff]
        %v493 = vld [vmem:[#allocation7 + $0x58] sm:$0xff]
        %v494 = vld [vmem:[#allocation7 + $0x60] sm:$0xff]
        %v495 = vld [vmem:[#allocation7 + $0x68] sm:$0xff]
        %v496 = vld [vmem:[#allocation7 + $0x70] sm:$0xff]
        %v497 = vld [vmem:[#allocation7 + $0x78] sm:$0xff]
        %v498 = vld [vmem:[#allocation7 + $0x80] sm:$0xff]
        %v499 = vld [vmem:[#allocation7 + $0x88] sm:$0xff]
        %v500 = vld [vmem:[#allocation7 + $0x90] sm:$0xff]
        %v501 = vld [vmem:[#allocation7 + $0x98] sm:$0xff]
        %v502 = vld [vmem:[#allocation7 + $0xa0] sm:$0xff]
        %v503 = vld [vmem:[#allocation7 + $0xa8] sm:$0xff]
        %v504 = vld [vmem:[#allocation7 + $0xb0] sm:$0xff]
        %v505 = vld [vmem:[#allocation7 + $0xb8] sm:$0xff]
        %v506 = vld [vmem:[#allocation7 + $0xc0] sm:$0xff]
        %v507 = vld [vmem:[#allocation7 + $0xc8] sm:$0xff]
        %v508 = vld [vmem:[#allocation7 + $0xd0] sm:$0xff]
        %v509 = vld [vmem:[#allocation7 + $0xd8] sm:$0xff]
        %v510 = vld [vmem:[#allocation7 + $0xe0] sm:$0xff]
        %v511 = vld [vmem:[#allocation7 + $0xe8] sm:$0xff]
        %v512 = vld [vmem:[#allocation7 + $0xf0] sm:$0xff]
        %v513 = vld [vmem:[#allocation7 + $0xf8] sm:$0xff]
        %514 = vmatprep.subr.mxu0 0.0
        %515 = vmatpush1.msra.mxu0 %v497
        %516 = vmatprep.subr.mxu0 0.0
        %517 = vmatpush1.msra.mxu0 %v496
        %518 = vmatprep.subr.mxu0 0.0
        %519 = vmatpush1.msra.mxu0 %v495
        %520 = vmatprep.subr.mxu0 0.0
        %521 = vmatpush1.msra.mxu0 %v494
        %522 = vmatprep.subr.mxu0 0.0
        %523 = vmatpush1.msra.mxu0 %v493
        %524 = vmatprep.subr.mxu0 0.0
        %525 = vmatpush1.msra.mxu0 %v492
        %526 = vmatprep.subr.mxu0 0.0
        %527 = vmatpush1.msra.mxu0 %v491
        %528 = vmatprep.subr.mxu0 0.0
        %529 = vmatpush1.msra.mxu0 %v490
        %530 = vmatprep.subr.mxu0 0.0
        %531 = vmatpush1.msra.mxu0 %v489
        %532 = vmatprep.subr.mxu0 0.0
        %533 = vmatpush1.msra.mxu0 %v488
        %534 = vmatprep.subr.mxu0 0.0
        %535 = vmatpush1.msra.mxu0 %v487
        %536 = vmatprep.subr.mxu0 0.0
        %537 = vmatpush1.msra.mxu0 %v486
        %538 = vmatprep.subr.mxu0 0.0
        %539 = vmatpush1.msra.mxu0 %v485
        %540 = vmatprep.subr.mxu0 0.0
        %541 = vmatpush1.msra.mxu0 %v484
        %542 = vmatprep.subr.mxu0 0.0
        %543 = vmatpush1.msra.mxu0 %v483
        %544 = vmatprep.subr.mxu0 0.0
        %545 = vmatpush1.msra.mxu0 %v482
        %546 = vmatprep.subr.mxu0 0.0
        %547 = vmatpush2.msra.mxu0 %v513
        %548 = vmatprep.subr.mxu0 0.0
        %549 = vmatpush2.msra.mxu0 %v512
        %550 = vmatprep.subr.mxu0 0.0
        %551 = vmatpush2.msra.mxu0 %v511
        %552 = vmatprep.subr.mxu0 0.0
        %553 = vmatpush2.msra.mxu0 %v510
        %554 = vmatprep.subr.mxu0 0.0
        %555 = vmatpush2.msra.mxu0 %v509
        %556 = vmatprep.subr.mxu0 0.0
        %557 = vmatpush2.msra.mxu0 %v508
        %558 = vmatprep.subr.mxu0 0.0
        %559 = vmatpush2.msra.mxu0 %v507
        %560 = vmatprep.subr.mxu0 0.0
        %561 = vmatpush2.msra.mxu0 %v506
        %562 = vmatprep.subr.mxu0 0.0
        %563 = vmatpush2.msra.mxu0 %v505
        %564 = vmatprep.subr.mxu0 0.0
        %565 = vmatpush2.msra.mxu0 %v504
        %566 = vmatprep.subr.mxu0 0.0
        %567 = vmatpush2.msra.mxu0 %v503
        %568 = vmatprep.subr.mxu0 0.0
        %569 = vmatpush2.msra.mxu0 %v502
        %570 = vmatprep.subr.mxu0 0.0
        %571 = vmatpush2.msra.mxu0 %v501
        %572 = vmatprep.subr.mxu0 0.0
        %573 = vmatpush2.msra.mxu0 %v500
        %574 = vmatprep.subr.mxu0 0.0
        %575 = vmatpush2.msra.mxu0 %v499
        %576 = vmatprep.subr.mxu0 0.0
        %577 = vmatpush2.msra.mxu0 %v498
        %578 = vmatprep.mubr.f32.mxu0 %v419
        %579 = vmatmul.mubr.f32.gmra.mxu0 %v418
        %v580 = vpop.f32.mrf.mxu0
        %v581 = vadd.f32 0.0, %v580
        %v582 = vpop.f32.mrf.mxu0
        %583 = vmatprep.mubr.f32.mxu0 %v421
        %584 = vmatmul.mubr.f32.gmra.mxu0 %v420
        %v585 = vpop.f32.mrf.mxu0
        %v586 = vadd.f32 0.0, %v585
        %v587 = vpop.f32.mrf.mxu0
        %588 = vmatprep.mubr.f32.mxu0 %v423
        %589 = vmatmul.mubr.f32.gmra.mxu0 %v422
        %v590 = vpop.f32.mrf.mxu0
        %v591 = vadd.f32 0.0, %v590
        %v592 = vpop.f32.mrf.mxu0
        %593 = vmatprep.mubr.f32.mxu0 %v425
        %594 = vmatmul.mubr.f32.gmra.mxu0 %v424
        %v595 = vpop.f32.mrf.mxu0
        %v596 = vadd.f32 0.0, %v595
        %v597 = vpop.f32.mrf.mxu0
        %598 = vmatprep.mubr.f32.mxu0 %v427
        %599 = vmatmul.mubr.f32.gmra.mxu0 %v426
        %v600 = vpop.f32.mrf.mxu0
        %v601 = vadd.f32 0.0, %v600
        %v602 = vpop.f32.mrf.mxu0
        %603 = vmatprep.mubr.f32.mxu0 %v429
        %604 = vmatmul.mubr.f32.gmra.mxu0 %v428
        %v605 = vpop.f32.mrf.mxu0
        %v606 = vadd.f32 0.0, %v605
        %v607 = vpop.f32.mrf.mxu0
        %608 = vmatprep.mubr.f32.mxu0 %v431
        %609 = vmatmul.mubr.f32.gmra.mxu0 %v430
        %v610 = vpop.f32.mrf.mxu0
        %v611 = vadd.f32 0.0, %v610
        %v612 = vpop.f32.mrf.mxu0
        %613 = vmatprep.mubr.f32.mxu0 %v433
        %614 = vmatmul.mubr.f32.gmra.mxu0 %v432
        %v615 = vpop.f32.mrf.mxu0
        %v616 = vadd.f32 0.0, %v615
        %v617 = vpop.f32.mrf.mxu0
        %618 = vmatprep.mubr.f32.mxu0 %v435
        %619 = vmatmul.mubr.f32.gmra.mxu0 %v434
        %v620 = vpop.f32.mrf.mxu0
        %v621 = vadd.f32 0.0, %v620
        %v622 = vpop.f32.mrf.mxu0
        %623 = vmatprep.mubr.f32.mxu0 %v437
        %624 = vmatmul.mubr.f32.gmra.mxu0 %v436
        %v625 = vpop.f32.mrf.mxu0
        %v626 = vadd.f32 0.0, %v625
        %v627 = vpop.f32.mrf.mxu0
        %628 = vmatprep.mubr.f32.mxu0 %v439
        %629 = vmatmul.mubr.f32.gmra.mxu0 %v438
        %v630 = vpop.f32.mrf.mxu0
        %v631 = vadd.f32 0.0, %v630
        %v632 = vpop.f32.mrf.mxu0
        %633 = vmatprep.mubr.f32.mxu0 %v441
        %634 = vmatmul.mubr.f32.gmra.mxu0 %v440
        %v635 = vpop.f32.mrf.mxu0
        %v636 = vadd.f32 0.0, %v635
        %v637 = vpop.f32.mrf.mxu0
        %638 = vmatprep.mubr.f32.mxu0 %v443
        %639 = vmatmul.mubr.f32.gmra.mxu0 %v442
        %v640 = vpop.f32.mrf.mxu0
        %v641 = vadd.f32 0.0, %v640
        %v642 = vpop.f32.mrf.mxu0
        %643 = vmatprep.mubr.f32.mxu0 %v445
        %644 = vmatmul.mubr.f32.gmra.mxu0 %v444
        %v645 = vpop.f32.mrf.mxu0
        %v646 = vadd.f32 0.0, %v645
        %v647 = vpop.f32.mrf.mxu0
        %648 = vmatprep.mubr.f32.mxu0 %v447
        %649 = vmatmul.mubr.f32.gmra.mxu0 %v446
        %v650 = vpop.f32.mrf.mxu0
        %v651 = vadd.f32 0.0, %v650
        %v652 = vpop.f32.mrf.mxu0
        %653 = vmatprep.mubr.f32.mxu0 %v449
        %654 = vmatmul.mubr.f32.gmra.mxu0 %v448
        %v655 = vpop.f32.mrf.mxu0
        %v656 = vadd.f32 0.0, %v655
        %v657 = vpop.f32.mrf.mxu0
        %658 = vmatprep.mubr.f32.mxu0 %v451
        %659 = vmatmul.mubr.f32.gmra.mxu0 %v450
        %v660 = vpop.f32.mrf.mxu0
        %v661 = vadd.f32 0.0, %v660
        %v662 = vpop.f32.mrf.mxu0
        %663 = vmatprep.mubr.f32.mxu0 %v453
        %664 = vmatmul.mubr.f32.gmra.mxu0 %v452
        %v665 = vpop.f32.mrf.mxu0
        %v666 = vadd.f32 0.0, %v665
        %v667 = vpop.f32.mrf.mxu0
        %668 = vmatprep.mubr.f32.mxu0 %v455
        %669 = vmatmul.mubr.f32.gmra.mxu0 %v454
        %v670 = vpop.f32.mrf.mxu0
        %v671 = vadd.f32 0.0, %v670
        %v672 = vpop.f32.mrf.mxu0
        %673 = vmatprep.mubr.f32.mxu0 %v457
        %674 = vmatmul.mubr.f32.gmra.mxu0 %v456
        %v675 = vpop.f32.mrf.mxu0
        %v676 = vadd.f32 0.0, %v675
        %v677 = vpop.f32.mrf.mxu0
        %678 = vmatprep.mubr.f32.mxu0 %v459
        %679 = vmatmul.mubr.f32.gmra.mxu0 %v458
        %v680 = vpop.f32.mrf.mxu0
        %v681 = vadd.f32 0.0, %v680
        %v682 = vpop.f32.mrf.mxu0
        %683 = vmatprep.mubr.f32.mxu0 %v461
        %684 = vmatmul.mubr.f32.gmra.mxu0 %v460
        %v685 = vpop.f32.mrf.mxu0
        %v686 = vadd.f32 0.0, %v685
        %v687 = vpop.f32.mrf.mxu0
        %688 = vmatprep.mubr.f32.mxu0 %v463
        %689 = vmatmul.mubr.f32.gmra.mxu0 %v462
        %v690 = vpop.f32.mrf.mxu0
        %v691 = vadd.f32 0.0, %v690
        %v692 = vpop.f32.mrf.mxu0
        %693 = vmatprep.mubr.f32.mxu0 %v465
        %694 = vmatmul.mubr.f32.gmra.mxu0 %v464
        %v695 = vpop.f32.mrf.mxu0
        %v696 = vadd.f32 0.0, %v695
        %v697 = vpop.f32.mrf.mxu0
        %698 = vmatprep.mubr.f32.mxu0 %v467
        %699 = vmatmul.mubr.f32.gmra.mxu0 %v466
        %v700 = vpop.f32.mrf.mxu0
        %v701 = vadd.f32 0.0, %v700
        %v702 = vpop.f32.mrf.mxu0
        %703 = vmatprep.mubr.f32.mxu0 %v469
        %704 = vmatmul.mubr.f32.gmra.mxu0 %v468
        %v705 = vpop.f32.mrf.mxu0
        %v706 = vadd.f32 0.0, %v705
        %v707 = vpop.f32.mrf.mxu0
        %708 = vmatprep.mubr.f32.mxu0 %v471
        %709 = vmatmul.mubr.f32.gmra.mxu0 %v470
        %v710 = vpop.f32.mrf.mxu0
        %v711 = vadd.f32 0.0, %v710
        %v712 = vpop.f32.mrf.mxu0
        %713 = vmatprep.mubr.f32.mxu0 %v473
        %714 = vmatmul.mubr.f32.gmra.mxu0 %v472
        %v715 = vpop.f32.mrf.mxu0
        %v716 = vadd.f32 0.0, %v715
        %v717 = vpop.f32.mrf.mxu0
        %718 = vmatprep.mubr.f32.mxu0 %v475
        %719 = vmatmul.mubr.f32.gmra.mxu0 %v474
        %v720 = vpop.f32.mrf.mxu0
        %v721 = vadd.f32 0.0, %v720
        %v722 = vpop.f32.mrf.mxu0
        %723 = vmatprep.mubr.f32.mxu0 %v477
        %724 = vmatmul.mubr.f32.gmra.mxu0 %v476
        %v725 = vpop.f32.mrf.mxu0
        %v726 = vadd.f32 0.0, %v725
        %v727 = vpop.f32.mrf.mxu0
        %728 = vmatprep.mubr.f32.mxu0 %v479
        %729 = vmatmul.mubr.f32.gmra.mxu0 %v478
        %v730 = vpop.f32.mrf.mxu0
        %v731 = vadd.f32 0.0, %v730
        %v732 = vpop.f32.mrf.mxu0
        %733 = vmatprep.mubr.f32.mxu0 %v481
        %734 = vmatmul.mubr.f32.gmra.mxu0 %v480
        %v735 = vpop.f32.mrf.mxu0
        %v736 = vadd.f32 0.0, %v735
        %v737 = vpop.f32.mrf.mxu0
        %738 = vdwg.mxu0
        %v739 = vadd.f32 %v386, %v581
        %v740 = vadd.f32 %v387, %v586
        %v741 = vadd.f32 %v388, %v591
        %v742 = vadd.f32 %v389, %v596
        %v743 = vadd.f32 %v390, %v601
        %v744 = vadd.f32 %v391, %v606
        %v745 = vadd.f32 %v392, %v611
        %v746 = vadd.f32 %v393, %v616
        %v747 = vadd.f32 %v394, %v621
        %v748 = vadd.f32 %v395, %v626
        %v749 = vadd.f32 %v396, %v631
        %v750 = vadd.f32 %v397, %v636
        %v751 = vadd.f32 %v398, %v641
        %v752 = vadd.f32 %v399, %v646
        %v753 = vadd.f32 %v400, %v651
        %v754 = vadd.f32 %v401, %v656
        %v755 = vadd.f32 %v402, %v661
        %v756 = vadd.f32 %v403, %v666
        %v757 = vadd.f32 %v404, %v671
        %v758 = vadd.f32 %v405, %v676
        %v759 = vadd.f32 %v406, %v681
        %v760 = vadd.f32 %v407, %v686
        %v761 = vadd.f32 %v408, %v691
        %v762 = vadd.f32 %v409, %v696
        %v763 = vadd.f32 %v410, %v701
        %v764 = vadd.f32 %v411, %v706
        %v765 = vadd.f32 %v412, %v711
        %v766 = vadd.f32 %v413, %v716
        %v767 = vadd.f32 %v414, %v721
        %v768 = vadd.f32 %v415, %v726
        %v769 = vadd.f32 %v416, %v731
        %v770 = vadd.f32 %v417, %v736
        %771 = vst [vmem:[#allocation3] sm:$0xff] %v739
        %772 = vst [vmem:[#allocation3 + $0x8] sm:$0xff] %v740
        %773 = vst [vmem:[#allocation3 + $0x10] sm:$0xff] %v741
        %774 = vst [vmem:[#allocation3 + $0x18] sm:$0xff] %v742
        %775 = vst [vmem:[#allocation3 + $0x20] sm:$0xff] %v743
        %776 = vst [vmem:[#allocation3 + $0x28] sm:$0xff] %v744
        %777 = vst [vmem:[#allocation3 + $0x30] sm:$0xff] %v745
        %778 = vst [vmem:[#allocation3 + $0x38] sm:$0xff] %v746
        %779 = vst [vmem:[#allocation3 + $0x40] sm:$0xff] %v747
        %780 = vst [vmem:[#allocation3 + $0x48] sm:$0xff] %v748
        %781 = vst [vmem:[#allocation3 + $0x50] sm:$0xff] %v749
        %782 = vst [vmem:[#allocation3 + $0x58] sm:$0xff] %v750
        %783 = vst [vmem:[#allocation3 + $0x60] sm:$0xff] %v751
        %784 = vst [vmem:[#allocation3 + $0x68] sm:$0xff] %v752
        %785 = vst [vmem:[#allocation3 + $0x70] sm:$0xff] %v753
        %786 = vst [vmem:[#allocation3 + $0x78] sm:$0xff] %v754
        %787 = vst [vmem:[#allocation3 + $0x80] sm:$0xff] %v755
        %788 = vst [vmem:[#allocation3 + $0x88] sm:$0xff] %v756
        %789 = vst [vmem:[#allocation3 + $0x90] sm:$0xff] %v757
        %790 = vst [vmem:[#allocation3 + $0x98] sm:$0xff] %v758
        %791 = vst [vmem:[#allocation3 + $0xa0] sm:$0xff] %v759
        %792 = vst [vmem:[#allocation3 + $0xa8] sm:$0xff] %v760
        %793 = vst [vmem:[#allocation3 + $0xb0] sm:$0xff] %v761
        %794 = vst [vmem:[#allocation3 + $0xb8] sm:$0xff] %v762
        %795 = vst [vmem:[#allocation3 + $0xc0] sm:$0xff] %v763
        %796 = vst [vmem:[#allocation3 + $0xc8] sm:$0xff] %v764
        %797 = vst [vmem:[#allocation3 + $0xd0] sm:$0xff] %v765
        %798 = vst [vmem:[#allocation3 + $0xd8] sm:$0xff] %v766
        %799 = vst [vmem:[#allocation3 + $0xe0] sm:$0xff] %v767
        %800 = vst [vmem:[#allocation3 + $0xe8] sm:$0xff] %v768
        %801 = vst [vmem:[#allocation3 + $0xf0] sm:$0xff] %v769
        %802 = vst [vmem:[#allocation3 + $0xf8] sm:$0xff] %v770
        // Predicated region
        $region61: #{tpu_custom_call.1} parent=35 // pred_check
          %p803 = pneg %p314
        $region62: #{tpu_custom_call.1} parent=35 // pred_check_branch
          %805 = sbr.rel (%p803) target = $region64
        $region63: #{tpu_custom_call.1} parent=35 // pred_region
          %v806 = vld [vmem:[#allocation2] sm:$0xff]
          %v807 = vld [vmem:[#allocation2 + $0x8] sm:$0xff]
          %v808 = vld [vmem:[#allocation2 + $0x10] sm:$0xff]
          %v809 = vld [vmem:[#allocation2 + $0x18] sm:$0xff]
          %v810 = vld [vmem:[#allocation2 + $0x20] sm:$0xff]
          %v811 = vld [vmem:[#allocation2 + $0x28] sm:$0xff]
          %v812 = vld [vmem:[#allocation2 + $0x30] sm:$0xff]
          %v813 = vld [vmem:[#allocation2 + $0x38] sm:$0xff]
          %v814 = vld [vmem:[#allocation2 + $0x40] sm:$0xff]
          %v815 = vld [vmem:[#allocation2 + $0x48] sm:$0xff]
          %v816 = vld [vmem:[#allocation2 + $0x50] sm:$0xff]
          %v817 = vld [vmem:[#allocation2 + $0x58] sm:$0xff]
          %v818 = vld [vmem:[#allocation2 + $0x60] sm:$0xff]
          %v819 = vld [vmem:[#allocation2 + $0x68] sm:$0xff]
          %v820 = vld [vmem:[#allocation2 + $0x70] sm:$0xff]
          %v821 = vld [vmem:[#allocation2 + $0x78] sm:$0xff]
          %v822 = vld [vmem:[#allocation2 + $0x80] sm:$0xff]
          %v823 = vld [vmem:[#allocation2 + $0x88] sm:$0xff]
          %v824 = vld [vmem:[#allocation2 + $0x90] sm:$0xff]
          %v825 = vld [vmem:[#allocation2 + $0x98] sm:$0xff]
          %v826 = vld [vmem:[#allocation2 + $0xa0] sm:$0xff]
          %v827 = vld [vmem:[#allocation2 + $0xa8] sm:$0xff]
          %v828 = vld [vmem:[#allocation2 + $0xb0] sm:$0xff]
          %v829 = vld [vmem:[#allocation2 + $0xb8] sm:$0xff]
          %v830 = vld [vmem:[#allocation2 + $0xc0] sm:$0xff]
          %v831 = vld [vmem:[#allocation2 + $0xc8] sm:$0xff]
          %v832 = vld [vmem:[#allocation2 + $0xd0] sm:$0xff]
          %v833 = vld [vmem:[#allocation2 + $0xd8] sm:$0xff]
          %v834 = vld [vmem:[#allocation2 + $0xe0] sm:$0xff]
          %v835 = vld [vmem:[#allocation2 + $0xe8] sm:$0xff]
          %v836 = vld [vmem:[#allocation2 + $0xf0] sm:$0xff]
          %v837 = vld [vmem:[#allocation2 + $0xf8] sm:$0xff]
          %v838 = vld [vmem:[#allocation3] sm:$0xff]
          %v839 = vld [vmem:[#allocation3 + $0x8] sm:$0xff]
          %v840 = vld [vmem:[#allocation3 + $0x10] sm:$0xff]
          %v841 = vld [vmem:[#allocation3 + $0x18] sm:$0xff]
          %v842 = vld [vmem:[#allocation3 + $0x20] sm:$0xff]
          %v843 = vld [vmem:[#allocation3 + $0x28] sm:$0xff]
          %v844 = vld [vmem:[#allocation3 + $0x30] sm:$0xff]
          %v845 = vld [vmem:[#allocation3 + $0x38] sm:$0xff]
          %v846 = vld [vmem:[#allocation3 + $0x40] sm:$0xff]
          %v847 = vld [vmem:[#allocation3 + $0x48] sm:$0xff]
          %v848 = vld [vmem:[#allocation3 + $0x50] sm:$0xff]
          %v849 = vld [vmem:[#allocation3 + $0x58] sm:$0xff]
          %v850 = vld [vmem:[#allocation3 + $0x60] sm:$0xff]
          %v851 = vld [vmem:[#allocation3 + $0x68] sm:$0xff]
          %v852 = vld [vmem:[#allocation3 + $0x70] sm:$0xff]
          %v853 = vld [vmem:[#allocation3 + $0x78] sm:$0xff]
          %v854 = vld [vmem:[#allocation3 + $0x80] sm:$0xff]
          %v855 = vld [vmem:[#allocation3 + $0x88] sm:$0xff]
          %v856 = vld [vmem:[#allocation3 + $0x90] sm:$0xff]
          %v857 = vld [vmem:[#allocation3 + $0x98] sm:$0xff]
          %v858 = vld [vmem:[#allocation3 + $0xa0] sm:$0xff]
          %v859 = vld [vmem:[#allocation3 + $0xa8] sm:$0xff]
          %v860 = vld [vmem:[#allocation3 + $0xb0] sm:$0xff]
          %v861 = vld [vmem:[#allocation3 + $0xb8] sm:$0xff]
          %v862 = vld [vmem:[#allocation3 + $0xc0] sm:$0xff]
          %v863 = vld [vmem:[#allocation3 + $0xc8] sm:$0xff]
          %v864 = vld [vmem:[#allocation3 + $0xd0] sm:$0xff]
          %v865 = vld [vmem:[#allocation3 + $0xd8] sm:$0xff]
          %v866 = vld [vmem:[#allocation3 + $0xe0] sm:$0xff]
          %v867 = vld [vmem:[#allocation3 + $0xe8] sm:$0xff]
          %v868 = vld [vmem:[#allocation3 + $0xf0] sm:$0xff]
          %v869 = vld [vmem:[#allocation3 + $0xf8] sm:$0xff]
          %v870 = vld [vmem:[%s280] sm:$0xff]
          %v871 = vld [vmem:[%s280 + $0x8] sm:$0xff]
          %v872 = vld [vmem:[%s280 + $0x10] sm:$0xff]
          %v873 = vld [vmem:[%s280 + $0x18] sm:$0xff]
          %v874 = vld [vmem:[%s280 + $0x20] sm:$0xff]
          %v875 = vld [vmem:[%s280 + $0x28] sm:$0xff]
          %v876 = vld [vmem:[%s280 + $0x30] sm:$0xff]
          %v877 = vld [vmem:[%s280 + $0x38] sm:$0xff]
          %v878 = vld [vmem:[%s280 + $0x40] sm:$0xff]
          %v879 = vld [vmem:[%s280 + $0x48] sm:$0xff]
          %v880 = vld [vmem:[%s280 + $0x50] sm:$0xff]
          %v881 = vld [vmem:[%s280 + $0x58] sm:$0xff]
          %v882 = vld [vmem:[%s280 + $0x60] sm:$0xff]
          %v883 = vld [vmem:[%s280 + $0x68] sm:$0xff]
          %v884 = vld [vmem:[%s280 + $0x70] sm:$0xff]
          %v885 = vld [vmem:[%s280 + $0x78] sm:$0xff]
          %886 = vmatprep.subr.mxu0 0.0
          %887 = vmatpush1.msra.mxu0 %v885
          %888 = vmatprep.subr.mxu0 0.0
          %889 = vmatpush1.msra.mxu0 %v884
          %890 = vmatprep.subr.mxu0 0.0
          %891 = vmatpush1.msra.mxu0 %v883
          %892 = vmatprep.subr.mxu0 0.0
          %893 = vmatpush1.msra.mxu0 %v882
          %894 = vmatprep.subr.mxu0 0.0
          %895 = vmatpush1.msra.mxu0 %v881
          %896 = vmatprep.subr.mxu0 0.0
          %897 = vmatpush1.msra.mxu0 %v880
          %898 = vmatprep.subr.mxu0 0.0
          %899 = vmatpush1.msra.mxu0 %v879
          %900 = vmatprep.subr.mxu0 0.0
          %901 = vmatpush1.msra.mxu0 %v878
          %902 = vmatprep.subr.mxu0 0.0
          %903 = vmatpush1.msra.mxu0 %v877
          %904 = vmatprep.subr.mxu0 0.0
          %905 = vmatpush1.msra.mxu0 %v876
          %906 = vmatprep.subr.mxu0 0.0
          %907 = vmatpush1.msra.mxu0 %v875
          %908 = vmatprep.subr.mxu0 0.0
          %909 = vmatpush1.msra.mxu0 %v874
          %910 = vmatprep.subr.mxu0 0.0
          %911 = vmatpush1.msra.mxu0 %v873
          %912 = vmatprep.subr.mxu0 0.0
          %913 = vmatpush1.msra.mxu0 %v872
          %914 = vmatprep.subr.mxu0 0.0
          %915 = vmatpush1.msra.mxu0 %v871
          %916 = vmatprep.subr.mxu0 0.0
          %917 = vmatpush1.msra.mxu0 %v870
          %918 = vmatprep.subr.mxu0 0.0
          %919 = vmatpush2.msra.mxu0 0.0
          %920 = vmatprep.subr.mxu0 0.0
          %921 = vmatpush2.msra.mxu0 0.0
          %922 = vmatprep.subr.mxu0 0.0
          %923 = vmatpush2.msra.mxu0 0.0
          %924 = vmatprep.subr.mxu0 0.0
          %925 = vmatpush2.msra.mxu0 0.0
          %926 = vmatprep.subr.mxu0 0.0
          %927 = vmatpush2.msra.mxu0 0.0
          %928 = vmatprep.subr.mxu0 0.0
          %929 = vmatpush2.msra.mxu0 0.0
          %930 = vmatprep.subr.mxu0 0.0
          %931 = vmatpush2.msra.mxu0 0.0
          %932 = vmatprep.subr.mxu0 0.0
          %933 = vmatpush2.msra.mxu0 0.0
          %934 = vmatprep.subr.mxu0 0.0
          %935 = vmatpush2.msra.mxu0 0.0
          %936 = vmatprep.subr.mxu0 0.0
          %937 = vmatpush2.msra.mxu0 0.0
          %938 = vmatprep.subr.mxu0 0.0
          %939 = vmatpush2.msra.mxu0 0.0
          %940 = vmatprep.subr.mxu0 0.0
          %941 = vmatpush2.msra.mxu0 0.0
          %942 = vmatprep.subr.mxu0 0.0
          %943 = vmatpush2.msra.mxu0 0.0
          %944 = vmatprep.subr.mxu0 0.0
          %945 = vmatpush2.msra.mxu0 0.0
          %946 = vmatprep.subr.mxu0 0.0
          %947 = vmatpush2.msra.mxu0 0.0
          %948 = vmatprep.subr.mxu0 0.0
          %949 = vmatpush2.msra.mxu0 0.0
          %950 = vmatprep.mubr.f32.mxu0 0.0
          %951 = vmatmul.mubr.f32.gmra.mxu0 %v838
          %v952 = vpop.f32.mrf.mxu0
          %v953 = vadd.f32 0.0, %v952
          %v954 = vpop.f32.mrf.mxu0
          %955 = vmatprep.mubr.f32.mxu0 0.0
          %956 = vmatmul.mubr.f32.gmra.mxu0 %v839
          %v957 = vpop.f32.mrf.mxu0
          %v958 = vadd.f32 0.0, %v957
          %v959 = vpop.f32.mrf.mxu0
          %960 = vmatprep.mubr.f32.mxu0 0.0
          %961 = vmatmul.mubr.f32.gmra.mxu0 %v840
          %v962 = vpop.f32.mrf.mxu0
          %v963 = vadd.f32 0.0, %v962
          %v964 = vpop.f32.mrf.mxu0
          %965 = vmatprep.mubr.f32.mxu0 0.0
          %966 = vmatmul.mubr.f32.gmra.mxu0 %v841
          %v967 = vpop.f32.mrf.mxu0
          %v968 = vadd.f32 0.0, %v967
          %v969 = vpop.f32.mrf.mxu0
          %970 = vmatprep.mubr.f32.mxu0 0.0
          %971 = vmatmul.mubr.f32.gmra.mxu0 %v842
          %v972 = vpop.f32.mrf.mxu0
          %v973 = vadd.f32 0.0, %v972
          %v974 = vpop.f32.mrf.mxu0
          %975 = vmatprep.mubr.f32.mxu0 0.0
          %976 = vmatmul.mubr.f32.gmra.mxu0 %v843
          %v977 = vpop.f32.mrf.mxu0
          %v978 = vadd.f32 0.0, %v977
          %v979 = vpop.f32.mrf.mxu0
          %980 = vmatprep.mubr.f32.mxu0 0.0
          %981 = vmatmul.mubr.f32.gmra.mxu0 %v844
          %v982 = vpop.f32.mrf.mxu0
          %v983 = vadd.f32 0.0, %v982
          %v984 = vpop.f32.mrf.mxu0
          %985 = vmatprep.mubr.f32.mxu0 0.0
          %986 = vmatmul.mubr.f32.gmra.mxu0 %v845
          %v987 = vpop.f32.mrf.mxu0
          %v988 = vadd.f32 0.0, %v987
          %v989 = vpop.f32.mrf.mxu0
          %990 = vmatprep.mubr.f32.mxu0 0.0
          %991 = vmatmul.mubr.f32.gmra.mxu0 %v846
          %v992 = vpop.f32.mrf.mxu0
          %v993 = vadd.f32 0.0, %v992
          %v994 = vpop.f32.mrf.mxu0
          %995 = vmatprep.mubr.f32.mxu0 0.0
          %996 = vmatmul.mubr.f32.gmra.mxu0 %v847
          %v997 = vpop.f32.mrf.mxu0
          %v998 = vadd.f32 0.0, %v997
          %v999 = vpop.f32.mrf.mxu0
          %1000 = vmatprep.mubr.f32.mxu0 0.0
          %1001 = vmatmul.mubr.f32.gmra.mxu0 %v848
          %v1002 = vpop.f32.mrf.mxu0
          %v1003 = vadd.f32 0.0, %v1002
          %v1004 = vpop.f32.mrf.mxu0
          %1005 = vmatprep.mubr.f32.mxu0 0.0
          %1006 = vmatmul.mubr.f32.gmra.mxu0 %v849
          %v1007 = vpop.f32.mrf.mxu0
          %v1008 = vadd.f32 0.0, %v1007
          %v1009 = vpop.f32.mrf.mxu0
          %1010 = vmatprep.mubr.f32.mxu0 0.0
          %1011 = vmatmul.mubr.f32.gmra.mxu0 %v850
          %v1012 = vpop.f32.mrf.mxu0
          %v1013 = vadd.f32 0.0, %v1012
          %v1014 = vpop.f32.mrf.mxu0
          %1015 = vmatprep.mubr.f32.mxu0 0.0
          %1016 = vmatmul.mubr.f32.gmra.mxu0 %v851
          %v1017 = vpop.f32.mrf.mxu0
          %v1018 = vadd.f32 0.0, %v1017
          %v1019 = vpop.f32.mrf.mxu0
          %1020 = vmatprep.mubr.f32.mxu0 0.0
          %1021 = vmatmul.mubr.f32.gmra.mxu0 %v852
          %v1022 = vpop.f32.mrf.mxu0
          %v1023 = vadd.f32 0.0, %v1022
          %v1024 = vpop.f32.mrf.mxu0
          %1025 = vmatprep.mubr.f32.mxu0 0.0
          %1026 = vmatmul.mubr.f32.gmra.mxu0 %v853
          %v1027 = vpop.f32.mrf.mxu0
          %v1028 = vadd.f32 0.0, %v1027
          %v1029 = vpop.f32.mrf.mxu0
          %1030 = vmatprep.mubr.f32.mxu0 0.0
          %1031 = vmatmul.mubr.f32.gmra.mxu0 %v854
          %v1032 = vpop.f32.mrf.mxu0
          %v1033 = vadd.f32 0.0, %v1032
          %v1034 = vpop.f32.mrf.mxu0
          %1035 = vmatprep.mubr.f32.mxu0 0.0
          %1036 = vmatmul.mubr.f32.gmra.mxu0 %v855
          %v1037 = vpop.f32.mrf.mxu0
          %v1038 = vadd.f32 0.0, %v1037
          %v1039 = vpop.f32.mrf.mxu0
          %1040 = vmatprep.mubr.f32.mxu0 0.0
          %1041 = vmatmul.mubr.f32.gmra.mxu0 %v856
          %v1042 = vpop.f32.mrf.mxu0
          %v1043 = vadd.f32 0.0, %v1042
          %v1044 = vpop.f32.mrf.mxu0
          %1045 = vmatprep.mubr.f32.mxu0 0.0
          %1046 = vmatmul.mubr.f32.gmra.mxu0 %v857
          %v1047 = vpop.f32.mrf.mxu0
          %v1048 = vadd.f32 0.0, %v1047
          %v1049 = vpop.f32.mrf.mxu0
          %1050 = vmatprep.mubr.f32.mxu0 0.0
          %1051 = vmatmul.mubr.f32.gmra.mxu0 %v858
          %v1052 = vpop.f32.mrf.mxu0
          %v1053 = vadd.f32 0.0, %v1052
          %v1054 = vpop.f32.mrf.mxu0
          %1055 = vmatprep.mubr.f32.mxu0 0.0
          %1056 = vmatmul.mubr.f32.gmra.mxu0 %v859
          %v1057 = vpop.f32.mrf.mxu0
          %v1058 = vadd.f32 0.0, %v1057
          %v1059 = vpop.f32.mrf.mxu0
          %1060 = vmatprep.mubr.f32.mxu0 0.0
          %1061 = vmatmul.mubr.f32.gmra.mxu0 %v860
          %v1062 = vpop.f32.mrf.mxu0
          %v1063 = vadd.f32 0.0, %v1062
          %v1064 = vpop.f32.mrf.mxu0
          %1065 = vmatprep.mubr.f32.mxu0 0.0
          %1066 = vmatmul.mubr.f32.gmra.mxu0 %v861
          %v1067 = vpop.f32.mrf.mxu0
          %v1068 = vadd.f32 0.0, %v1067
          %v1069 = vpop.f32.mrf.mxu0
          %1070 = vmatprep.mubr.f32.mxu0 0.0
          %1071 = vmatmul.mubr.f32.gmra.mxu0 %v862
          %v1072 = vpop.f32.mrf.mxu0
          %v1073 = vadd.f32 0.0, %v1072
          %v1074 = vpop.f32.mrf.mxu0
          %1075 = vmatprep.mubr.f32.mxu0 0.0
          %1076 = vmatmul.mubr.f32.gmra.mxu0 %v863
          %v1077 = vpop.f32.mrf.mxu0
          %v1078 = vadd.f32 0.0, %v1077
          %v1079 = vpop.f32.mrf.mxu0
          %1080 = vmatprep.mubr.f32.mxu0 0.0
          %1081 = vmatmul.mubr.f32.gmra.mxu0 %v864
          %v1082 = vpop.f32.mrf.mxu0
          %v1083 = vadd.f32 0.0, %v1082
          %v1084 = vpop.f32.mrf.mxu0
          %1085 = vmatprep.mubr.f32.mxu0 0.0
          %1086 = vmatmul.mubr.f32.gmra.mxu0 %v865
          %v1087 = vpop.f32.mrf.mxu0
          %v1088 = vadd.f32 0.0, %v1087
          %v1089 = vpop.f32.mrf.mxu0
          %1090 = vmatprep.mubr.f32.mxu0 0.0
          %1091 = vmatmul.mubr.f32.gmra.mxu0 %v866
          %v1092 = vpop.f32.mrf.mxu0
          %v1093 = vadd.f32 0.0, %v1092
          %v1094 = vpop.f32.mrf.mxu0
          %1095 = vmatprep.mubr.f32.mxu0 0.0
          %1096 = vmatmul.mubr.f32.gmra.mxu0 %v867
          %v1097 = vpop.f32.mrf.mxu0
          %v1098 = vadd.f32 0.0, %v1097
          %v1099 = vpop.f32.mrf.mxu0
          %1100 = vmatprep.mubr.f32.mxu0 0.0
          %1101 = vmatmul.mubr.f32.gmra.mxu0 %v868
          %v1102 = vpop.f32.mrf.mxu0
          %v1103 = vadd.f32 0.0, %v1102
          %v1104 = vpop.f32.mrf.mxu0
          %1105 = vmatprep.mubr.f32.mxu0 0.0
          %1106 = vmatmul.mubr.f32.gmra.mxu0 %v869
          %v1107 = vpop.f32.mrf.mxu0
          %v1108 = vadd.f32 0.0, %v1107
          %v1109 = vpop.f32.mrf.mxu0
          %1110 = vdwg.mxu0
          %v1111 = vadd.f32 %v806, %v953
          %v1112 = vadd.f32 %v807, %v958
          %v1113 = vadd.f32 %v808, %v963
          %v1114 = vadd.f32 %v809, %v968
          %v1115 = vadd.f32 %v810, %v973
          %v1116 = vadd.f32 %v811, %v978
          %v1117 = vadd.f32 %v812, %v983
          %v1118 = vadd.f32 %v813, %v988
          %v1119 = vadd.f32 %v814, %v993
          %v1120 = vadd.f32 %v815, %v998
          %v1121 = vadd.f32 %v816, %v1003
          %v1122 = vadd.f32 %v817, %v1008
          %v1123 = vadd.f32 %v818, %v1013
          %v1124 = vadd.f32 %v819, %v1018
          %v1125 = vadd.f32 %v820, %v1023
          %v1126 = vadd.f32 %v821, %v1028
          %v1127 = vadd.f32 %v822, %v1033
          %v1128 = vadd.f32 %v823, %v1038
          %v1129 = vadd.f32 %v824, %v1043
          %v1130 = vadd.f32 %v825, %v1048
          %v1131 = vadd.f32 %v826, %v1053
          %v1132 = vadd.f32 %v827, %v1058
          %v1133 = vadd.f32 %v828, %v1063
          %v1134 = vadd.f32 %v829, %v1068
          %v1135 = vadd.f32 %v830, %v1073
          %v1136 = vadd.f32 %v831, %v1078
          %v1137 = vadd.f32 %v832, %v1083
          %v1138 = vadd.f32 %v833, %v1088
          %v1139 = vadd.f32 %v834, %v1093
          %v1140 = vadd.f32 %v835, %v1098
          %v1141 = vadd.f32 %v836, %v1103
          %v1142 = vadd.f32 %v837, %v1108
          %1143 = vst [vmem:[#allocation2] sm:$0xff] %v1111
          %1144 = vst [vmem:[#allocation2 + $0x8] sm:$0xff] %v1112
          %1145 = vst [vmem:[#allocation2 + $0x10] sm:$0xff] %v1113
          %1146 = vst [vmem:[#allocation2 + $0x18] sm:$0xff] %v1114
          %1147 = vst [vmem:[#allocation2 + $0x20] sm:$0xff] %v1115
          %1148 = vst [vmem:[#allocation2 + $0x28] sm:$0xff] %v1116
          %1149 = vst [vmem:[#allocation2 + $0x30] sm:$0xff] %v1117
          %1150 = vst [vmem:[#allocation2 + $0x38] sm:$0xff] %v1118
          %1151 = vst [vmem:[#allocation2 + $0x40] sm:$0xff] %v1119
          %1152 = vst [vmem:[#allocation2 + $0x48] sm:$0xff] %v1120
          %1153 = vst [vmem:[#allocation2 + $0x50] sm:$0xff] %v1121
          %1154 = vst [vmem:[#allocation2 + $0x58] sm:$0xff] %v1122
          %1155 = vst [vmem:[#allocation2 + $0x60] sm:$0xff] %v1123
          %1156 = vst [vmem:[#allocation2 + $0x68] sm:$0xff] %v1124
          %1157 = vst [vmem:[#allocation2 + $0x70] sm:$0xff] %v1125
          %1158 = vst [vmem:[#allocation2 + $0x78] sm:$0xff] %v1126
          %1159 = vst [vmem:[#allocation2 + $0x80] sm:$0xff] %v1127
          %1160 = vst [vmem:[#allocation2 + $0x88] sm:$0xff] %v1128
          %1161 = vst [vmem:[#allocation2 + $0x90] sm:$0xff] %v1129
          %1162 = vst [vmem:[#allocation2 + $0x98] sm:$0xff] %v1130
          %1163 = vst [vmem:[#allocation2 + $0xa0] sm:$0xff] %v1131
          %1164 = vst [vmem:[#allocation2 + $0xa8] sm:$0xff] %v1132
          %1165 = vst [vmem:[#allocation2 + $0xb0] sm:$0xff] %v1133
          %1166 = vst [vmem:[#allocation2 + $0xb8] sm:$0xff] %v1134
          %1167 = vst [vmem:[#allocation2 + $0xc0] sm:$0xff] %v1135
          %1168 = vst [vmem:[#allocation2 + $0xc8] sm:$0xff] %v1136
          %1169 = vst [vmem:[#allocation2 + $0xd0] sm:$0xff] %v1137
          %1170 = vst [vmem:[#allocation2 + $0xd8] sm:$0xff] %v1138
          %1171 = vst [vmem:[#allocation2 + $0xe0] sm:$0xff] %v1139
          %1172 = vst [vmem:[#allocation2 + $0xe8] sm:$0xff] %v1140
          %1173 = vst [vmem:[#allocation2 + $0xf0] sm:$0xff] %v1141
          %1174 = vst [vmem:[#allocation2 + $0xf8] sm:$0xff] %v1142
        $region64: #{tpu_custom_call.1} parent=35 // pred_fallthru
          _
        %p1175 = scmp.eq.s32.totalorder %s26, 4
        %p1176 = pnand %p1175, %p314
        %p1177 = pneg %p1176
        // Predicated region
        $region65: #{tpu_custom_call.1} parent=35 // pred_check
          _
        $region66: #{tpu_custom_call.1} parent=35 // pred_check_branch
          %1179 = sbr.rel (%p1176) target = $region68
        $region67: #{tpu_custom_call.1} parent=35 // pred_region
          %v1180 = vld [vmem:[#allocation2] sm:$0xff]
          %v1181 = vld [vmem:[#allocation2 + $0x8] sm:$0xff]
          %v1182 = vld [vmem:[#allocation2 + $0x10] sm:$0xff]
          %v1183 = vld [vmem:[#allocation2 + $0x18] sm:$0xff]
          %v1184 = vld [vmem:[#allocation2 + $0x20] sm:$0xff]
          %v1185 = vld [vmem:[#allocation2 + $0x28] sm:$0xff]
          %v1186 = vld [vmem:[#allocation2 + $0x30] sm:$0xff]
          %v1187 = vld [vmem:[#allocation2 + $0x38] sm:$0xff]
          %v1188 = vld [vmem:[#allocation2 + $0x40] sm:$0xff]
          %v1189 = vld [vmem:[#allocation2 + $0x48] sm:$0xff]
          %v1190 = vld [vmem:[#allocation2 + $0x50] sm:$0xff]
          %v1191 = vld [vmem:[#allocation2 + $0x58] sm:$0xff]
          %v1192 = vld [vmem:[#allocation2 + $0x60] sm:$0xff]
          %v1193 = vld [vmem:[#allocation2 + $0x68] sm:$0xff]
          %v1194 = vld [vmem:[#allocation2 + $0x70] sm:$0xff]
          %v1195 = vld [vmem:[#allocation2 + $0x78] sm:$0xff]
          %v1196 = vld [vmem:[#allocation2 + $0x80] sm:$0xff]
          %v1197 = vld [vmem:[#allocation2 + $0x88] sm:$0xff]
          %v1198 = vld [vmem:[#allocation2 + $0x90] sm:$0xff]
          %v1199 = vld [vmem:[#allocation2 + $0x98] sm:$0xff]
          %v1200 = vld [vmem:[#allocation2 + $0xa0] sm:$0xff]
          %v1201 = vld [vmem:[#allocation2 + $0xa8] sm:$0xff]
          %v1202 = vld [vmem:[#allocation2 + $0xb0] sm:$0xff]
          %v1203 = vld [vmem:[#allocation2 + $0xb8] sm:$0xff]
          %v1204 = vld [vmem:[#allocation2 + $0xc0] sm:$0xff]
          %v1205 = vld [vmem:[#allocation2 + $0xc8] sm:$0xff]
          %v1206 = vld [vmem:[#allocation2 + $0xd0] sm:$0xff]
          %v1207 = vld [vmem:[#allocation2 + $0xd8] sm:$0xff]
          %v1208 = vld [vmem:[#allocation2 + $0xe0] sm:$0xff]
          %v1209 = vld [vmem:[#allocation2 + $0xe8] sm:$0xff]
          %v1210 = vld [vmem:[#allocation2 + $0xf0] sm:$0xff]
          %v1211 = vld [vmem:[#allocation2 + $0xf8] sm:$0xff]
          %v1212 = vld [vmem:[#allocation10] sm:$0x1]
          %v1214 = vlaneseq
          %v1215 = vshrl.u32 %v1214, 7
          %v1216 = vsub.s32 0, %v1215
          %v1217 = vrot.slane %v1212, %v1216
          %v1219 = vadd.f32 %v1180, %v1217
          %v1220 = vadd.f32 %v1181, %v1217
          %v1221 = vadd.f32 %v1182, %v1217
          %v1222 = vadd.f32 %v1183, %v1217
          %v1223 = vadd.f32 %v1184, %v1217
          %v1224 = vadd.f32 %v1185, %v1217
          %v1225 = vadd.f32 %v1186, %v1217
          %v1226 = vadd.f32 %v1187, %v1217
          %v1227 = vadd.f32 %v1188, %v1217
          %v1228 = vadd.f32 %v1189, %v1217
          %v1229 = vadd.f32 %v1190, %v1217
          %v1230 = vadd.f32 %v1191, %v1217
          %v1231 = vadd.f32 %v1192, %v1217
          %v1232 = vadd.f32 %v1193, %v1217
          %v1233 = vadd.f32 %v1194, %v1217
          %v1234 = vadd.f32 %v1195, %v1217
          %v1235 = vadd.f32 %v1196, %v1217
          %v1236 = vadd.f32 %v1197, %v1217
          %v1237 = vadd.f32 %v1198, %v1217
          %v1238 = vadd.f32 %v1199, %v1217
          %v1239 = vadd.f32 %v1200, %v1217
          %v1240 = vadd.f32 %v1201, %v1217
          %v1241 = vadd.f32 %v1202, %v1217
          %v1242 = vadd.f32 %v1203, %v1217
          %v1243 = vadd.f32 %v1204, %v1217
          %v1244 = vadd.f32 %v1205, %v1217
          %v1245 = vadd.f32 %v1206, %v1217
          %v1246 = vadd.f32 %v1207, %v1217
          %v1247 = vadd.f32 %v1208, %v1217
          %v1248 = vadd.f32 %v1209, %v1217
          %v1249 = vadd.f32 %v1210, %v1217
          %v1250 = vadd.f32 %v1211, %v1217
          %v1251 = vmax.f32 %v1219, 0.0
          %v1252 = vmax.f32 %v1220, 0.0
          %v1253 = vmax.f32 %v1221, 0.0
          %v1254 = vmax.f32 %v1222, 0.0
          %v1255 = vmax.f32 %v1223, 0.0
          %v1256 = vmax.f32 %v1224, 0.0
          %v1257 = vmax.f32 %v1225, 0.0
          %v1258 = vmax.f32 %v1226, 0.0
          %v1259 = vmax.f32 %v1227, 0.0
          %v1260 = vmax.f32 %v1228, 0.0
          %v1261 = vmax.f32 %v1229, 0.0
          %v1262 = vmax.f32 %v1230, 0.0
          %v1263 = vmax.f32 %v1231, 0.0
          %v1264 = vmax.f32 %v1232, 0.0
          %v1265 = vmax.f32 %v1233, 0.0
          %v1266 = vmax.f32 %v1234, 0.0
          %v1267 = vmax.f32 %v1235, 0.0
          %v1268 = vmax.f32 %v1236, 0.0
          %v1269 = vmax.f32 %v1237, 0.0
          %v1270 = vmax.f32 %v1238, 0.0
          %v1271 = vmax.f32 %v1239, 0.0
          %v1272 = vmax.f32 %v1240, 0.0
          %v1273 = vmax.f32 %v1241, 0.0
          %v1274 = vmax.f32 %v1242, 0.0
          %v1275 = vmax.f32 %v1243, 0.0
          %v1276 = vmax.f32 %v1244, 0.0
          %v1277 = vmax.f32 %v1245, 0.0
          %v1278 = vmax.f32 %v1246, 0.0
          %v1279 = vmax.f32 %v1247, 0.0
          %v1280 = vmax.f32 %v1248, 0.0
          %v1281 = vmax.f32 %v1249, 0.0
          %v1282 = vmax.f32 %v1250, 0.0
          %v1283 = vld [vmem:[#allocation3] sm:$0xff]
          %v1284 = vld [vmem:[#allocation3 + $0x8] sm:$0xff]
          %v1285 = vld [vmem:[#allocation3 + $0x10] sm:$0xff]
          %v1286 = vld [vmem:[#allocation3 + $0x18] sm:$0xff]
          %v1287 = vld [vmem:[#allocation3 + $0x20] sm:$0xff]
          %v1288 = vld [vmem:[#allocation3 + $0x28] sm:$0xff]
          %v1289 = vld [vmem:[#allocation3 + $0x30] sm:$0xff]
          %v1290 = vld [vmem:[#allocation3 + $0x38] sm:$0xff]
          %v1291 = vld [vmem:[#allocation3 + $0x40] sm:$0xff]
          %v1292 = vld [vmem:[#allocation3 + $0x48] sm:$0xff]
          %v1293 = vld [vmem:[#allocation3 + $0x50] sm:$0xff]
          %v1294 = vld [vmem:[#allocation3 + $0x58] sm:$0xff]
          %v1295 = vld [vmem:[#allocation3 + $0x60] sm:$0xff]
          %v1296 = vld [vmem:[#allocation3 + $0x68] sm:$0xff]
          %v1297 = vld [vmem:[#allocation3 + $0x70] sm:$0xff]
          %v1298 = vld [vmem:[#allocation3 + $0x78] sm:$0xff]
          %v1299 = vld [vmem:[#allocation3 + $0x80] sm:$0xff]
          %v1300 = vld [vmem:[#allocation3 + $0x88] sm:$0xff]
          %v1301 = vld [vmem:[#allocation3 + $0x90] sm:$0xff]
          %v1302 = vld [vmem:[#allocation3 + $0x98] sm:$0xff]
          %v1303 = vld [vmem:[#allocation3 + $0xa0] sm:$0xff]
          %v1304 = vld [vmem:[#allocation3 + $0xa8] sm:$0xff]
          %v1305 = vld [vmem:[#allocation3 + $0xb0] sm:$0xff]
          %v1306 = vld [vmem:[#allocation3 + $0xb8] sm:$0xff]
          %v1307 = vld [vmem:[#allocation3 + $0xc0] sm:$0xff]
          %v1308 = vld [vmem:[#allocation3 + $0xc8] sm:$0xff]
          %v1309 = vld [vmem:[#allocation3 + $0xd0] sm:$0xff]
          %v1310 = vld [vmem:[#allocation3 + $0xd8] sm:$0xff]
          %v1311 = vld [vmem:[#allocation3 + $0xe0] sm:$0xff]
          %v1312 = vld [vmem:[#allocation3 + $0xe8] sm:$0xff]
          %v1313 = vld [vmem:[#allocation3 + $0xf0] sm:$0xff]
          %v1314 = vld [vmem:[#allocation3 + $0xf8] sm:$0xff]
          %v1315 = vadd.f32 %v1251, %v1283
          %v1316 = vadd.f32 %v1252, %v1284
          %v1317 = vadd.f32 %v1253, %v1285
          %v1318 = vadd.f32 %v1254, %v1286
          %v1319 = vadd.f32 %v1255, %v1287
          %v1320 = vadd.f32 %v1256, %v1288
          %v1321 = vadd.f32 %v1257, %v1289
          %v1322 = vadd.f32 %v1258, %v1290
          %v1323 = vadd.f32 %v1259, %v1291
          %v1324 = vadd.f32 %v1260, %v1292
          %v1325 = vadd.f32 %v1261, %v1293
          %v1326 = vadd.f32 %v1262, %v1294
          %v1327 = vadd.f32 %v1263, %v1295
          %v1328 = vadd.f32 %v1264, %v1296
          %v1329 = vadd.f32 %v1265, %v1297
          %v1330 = vadd.f32 %v1266, %v1298
          %v1331 = vadd.f32 %v1267, %v1299
          %v1332 = vadd.f32 %v1268, %v1300
          %v1333 = vadd.f32 %v1269, %v1301
          %v1334 = vadd.f32 %v1270, %v1302
          %v1335 = vadd.f32 %v1271, %v1303
          %v1336 = vadd.f32 %v1272, %v1304
          %v1337 = vadd.f32 %v1273, %v1305
          %v1338 = vadd.f32 %v1274, %v1306
          %v1339 = vadd.f32 %v1275, %v1307
          %v1340 = vadd.f32 %v1276, %v1308
          %v1341 = vadd.f32 %v1277, %v1309
          %v1342 = vadd.f32 %v1278, %v1310
          %v1343 = vadd.f32 %v1279, %v1311
          %v1344 = vadd.f32 %v1280, %v1312
          %v1345 = vadd.f32 %v1281, %v1313
          %v1346 = vadd.f32 %v1282, %v1314
          %1347 = vst [vmem:[#allocation11] sm:$0xff] %v1315
          %1348 = vst [vmem:[#allocation11 + $0x8] sm:$0xff] %v1316
          %1349 = vst [vmem:[#allocation11 + $0x10] sm:$0xff] %v1317
          %1350 = vst [vmem:[#allocation11 + $0x18] sm:$0xff] %v1318
          %1351 = vst [vmem:[#allocation11 + $0x20] sm:$0xff] %v1319
          %1352 = vst [vmem:[#allocation11 + $0x28] sm:$0xff] %v1320
          %1353 = vst [vmem:[#allocation11 + $0x30] sm:$0xff] %v1321
          %1354 = vst [vmem:[#allocation11 + $0x38] sm:$0xff] %v1322
          %1355 = vst [vmem:[#allocation11 + $0x40] sm:$0xff] %v1323
          %1356 = vst [vmem:[#allocation11 + $0x48] sm:$0xff] %v1324
          %1357 = vst [vmem:[#allocation11 + $0x50] sm:$0xff] %v1325
          %1358 = vst [vmem:[#allocation11 + $0x58] sm:$0xff] %v1326
          %1359 = vst [vmem:[#allocation11 + $0x60] sm:$0xff] %v1327
          %1360 = vst [vmem:[#allocation11 + $0x68] sm:$0xff] %v1328
          %1361 = vst [vmem:[#allocation11 + $0x70] sm:$0xff] %v1329
          %1362 = vst [vmem:[#allocation11 + $0x78] sm:$0xff] %v1330
          %1363 = vst [vmem:[#allocation11 + $0x80] sm:$0xff] %v1331
          %1364 = vst [vmem:[#allocation11 + $0x88] sm:$0xff] %v1332
          %1365 = vst [vmem:[#allocation11 + $0x90] sm:$0xff] %v1333
          %1366 = vst [vmem:[#allocation11 + $0x98] sm:$0xff] %v1334
          %1367 = vst [vmem:[#allocation11 + $0xa0] sm:$0xff] %v1335
          %1368 = vst [vmem:[#allocation11 + $0xa8] sm:$0xff] %v1336
          %1369 = vst [vmem:[#allocation11 + $0xb0] sm:$0xff] %v1337
          %1370 = vst [vmem:[#allocation11 + $0xb8] sm:$0xff] %v1338
          %1371 = vst [vmem:[#allocation11 + $0xc0] sm:$0xff] %v1339
          %1372 = vst [vmem:[#allocation11 + $0xc8] sm:$0xff] %v1340
          %1373 = vst [vmem:[#allocation11 + $0xd0] sm:$0xff] %v1341
          %1374 = vst [vmem:[#allocation11 + $0xd8] sm:$0xff] %v1342
          %1375 = vst [vmem:[#allocation11 + $0xe0] sm:$0xff] %v1343
          %1376 = vst [vmem:[#allocation11 + $0xe8] sm:$0xff] %v1344
          %1377 = vst [vmem:[#allocation11 + $0xf0] sm:$0xff] %v1345
          %1378 = vst [vmem:[#allocation11 + $0xf8] sm:$0xff] %v1346
        $region68: #{tpu_custom_call.1} parent=35 // pred_fallthru
          _
        // Predicated region
        $region69: #{tpu_custom_call.1} parent=35 // pred_check
          %p1379 = pneg %p160
        $region70: #{tpu_custom_call.1} parent=35 // pred_check_branch
          %1381 = sbr.rel (%p1379) target = $region72
        $region71: #{tpu_custom_call.1} parent=35 // pred_region
          %s1382 = smul.u32 32, %s25
          %s1384 = ssub.s32 4096, 4096
          %1385 = vsyncadd [#allocation6], %s1384
          %s1386 = smul.addr %s1382, 128
          %s1387 = scalar_lea.hbm %s4, %s1386
          %s1388 = sshll.u32 [#allocation11], 4
          %s1389 = int_to_ptr.vmem [resolvable:$true] %s1388
          %1394 = dma.vmem_to_hbm [thread:$0]  %s1389, 4096, %s1387, [#allocation6], 128, 128, 8
        $region72: #{tpu_custom_call.1} parent=35 // pred_fallthru
          _
        // Predicated region
        $region73: #{tpu_custom_call.1} parent=35 // pred_check
          %p1395 = pneg %p160
        $region74: #{tpu_custom_call.1} parent=35 // pred_check_branch
          %1397 = sbr.rel (%p1395) target = $region76
        $region75: #{tpu_custom_call.1} parent=35 // pred_region
          %1398 = dma.done [#allocation6], 4096
        $region76: #{tpu_custom_call.1} parent=35 // pred_fallthru
          _
      $region36: #{tpu_custom_call.1} parent=5 // pred_fallthru
        _
      %p1399 = scmp.le.s32.totalorder 2, %s15
      // Predicated region
      $region77: #{tpu_custom_call.1} parent=5 // pred_check
        %p1400 = pneg %p1399
      $region78: #{tpu_custom_call.1} parent=5 // pred_check_branch
        %1402 = sbr.rel (%p1400) target = $region80
      $region79: #{tpu_custom_call.1} parent=5 // pred_region
        %s1403 = ssub.s32 %s15, 2
      $region80: #{tpu_custom_call.1} parent=5 // pred_fallthru
        _
    $region6: #{tpu_custom_call.1} parent=1 // loop_footer
      %s19 = sadd.s32 1, %s15
    $region7: #{tpu_custom_call.1} parent=1 // loop_footer_branch
      %14 = sbr.rel target = $region3
    $region8: #{tpu_custom_call.1} parent=1 // loop_exit
      _
    %1404 = vsyncpa [#allocation5], 1
    %s1405 = scalar_lea.sflag [#allocation5], 1
    %1406 = vsyncpa %s1405, 1
    %1407 = vsyncpa [#allocation8], 1
    %1408 = vsyncpa [#allocation6], 1
    %s1409 = scalar_lea.sflag [#allocation6], 1
    %1410 = vsyncpa %s1409, 1

</llo_original>
